<compile_context>
chip_gen: v6e
topology: v6e:2x2x1
jax: 0.10.0
libtpu: 0.0.40
codegen_flags: <defaults>
</compile_context>

<pallas_src>
import functools
import math

import jax
import jax.numpy as jnp
from jax.experimental import pallas as pl
from jax.experimental.pallas import tpu as pltpu


# ----------------------------- in-kernel helpers -----------------------------

def _layernorm(x, gamma, beta, eps):
    # LayerNorm over the last dim in f32 (PyTorch eps=1e-5).
    mu = jnp.mean(x, axis=-1, keepdims=True)
    var = jnp.mean(jnp.square(x - mu), axis=-1, keepdims=True)
    return (x - mu) * jax.lax.rsqrt(var + eps) * gamma + beta


# ------------------------------ embedding linear ------------------------------

def _linear_kernel(x_ref, w_ref, b_ref, o_ref, *, relu):
    y = jnp.dot(x_ref[...], w_ref[...], preferred_element_type=jnp.float32)
    y = y + b_ref[...]
    if relu:
        y = jnp.maximum(y, 0.0)
    o_ref[...] = y.astype(o_ref.dtype)


def linear(x, w, b, relu=False, tm=256):
    # Token-tiled linear: grid over M only (K, N stay whole — tiny here).
    M, K = x.shape
    N = w.shape[1]
    tm = min(tm, M)
    return pl.pallas_call(
        functools.partial(_linear_kernel, relu=relu),
        grid=(pl.cdiv(M, tm),),
        in_specs=[pl.BlockSpec((tm, K), lambda i: (i, 0)),
                  pl.BlockSpec((K, N), lambda i: (0, 0)),
                  pl.BlockSpec((1, N), lambda i: (0, 0))],
        out_specs=pl.BlockSpec((tm, N), lambda i: (i, 0)),
        out_shape=jax.ShapeDtypeStruct((M, N), x.dtype),
        compiler_params=pltpu.CompilerParams(
            dimension_semantics=("parallel",)),
    )(x, w, b)


# --------------------------- fused encoder layer -----------------------------

def _encoder_layer_kernel(x_ref, wqkv_ref, bqkv_ref, wo_ref, bo_ref,
                          ln1_g_ref, ln1_b_ref, wf1_ref, bf1_ref,
                          wf2_ref, bf2_ref, ln2_g_ref, ln2_b_ref,
                          o_ref, *, num_head, eps):
    x = x_ref[0].astype(jnp.float32)                     # (S, H)
    S, H = x.shape
    Dh = H // num_head
    scale = 1.0 / math.sqrt(Dh)

    # Fused Q/K/V projection: one MXU matmul, lane width 3H.
    qkv = jnp.dot(x, wqkv_ref[...], preferred_element_type=jnp.float32)
    qkv = qkv + bqkv_ref[...]                            # (S, 3H)

    # Per-head attention; heads sliced along the lane (H) axis, statically
    # unrolled (num_head is a compile-time constant).
    heads = []
    for h in range(num_head):
        qh = qkv[:, h * Dh:(h + 1) * Dh]                 # (S, Dh)
        kh = qkv[:, H + h * Dh:H + (h + 1) * Dh]         # (S, Dh)
        vh = qkv[:, 2 * H + h * Dh:2 * H + (h + 1) * Dh] # (S, Dh)
        s = jax.lax.dot_general(qh, kh, (((1,), (1,)), ((), ())),
                                preferred_element_type=jnp.float32) * scale
        m = jnp.max(s, axis=-1, keepdims=True)
        p = jnp.exp(s - m)
        denom = jnp.sum(p, axis=-1, keepdims=True)
        p = p * pl.reciprocal(denom, approx=True)        # EUP instead of VALU div
        heads.append(jnp.dot(p, vh, preferred_element_type=jnp.float32))
    attn = jnp.concatenate(heads, axis=-1)               # (S, H)

    # Output projection + residual + LN1 (post-norm).
    attn = jnp.dot(attn, wo_ref[...], preferred_element_type=jnp.float32)
    attn = attn + bo_ref[...]
    x = _layernorm(x + attn, ln1_g_ref[...], ln1_b_ref[...], eps)

    # Feed-forward + residual + LN2.
    hmid = jnp.dot(x, wf1_ref[...], preferred_element_type=jnp.float32)
    hmid = jnp.maximum(hmid + bf1_ref[...], 0.0)
    ff = jnp.dot(hmid, wf2_ref[...], preferred_element_type=jnp.float32)
    ff = ff + bf2_ref[...]
    x = _layernorm(x + ff, ln2_g_ref[...], ln2_b_ref[...], eps)

    o_ref[0] = x.astype(o_ref.dtype)


def encoder_layer(x, layer, num_head, eps=1e-5):
    # x: (B, S, H)
    B, S, H = x.shape
    wqkv, bqkv = layer["wqkv"], layer["bqkv"]
    wo, bo = layer["wo"]
    g1, b1 = layer["ln1"]
    wf1, bf1 = layer["ff1"]
    wf2, bf2 = layer["ff2"]
    g2, b2 = layer["ln2"]
    weights = [wqkv, bqkv, wo, bo, g1, b1, wf1, bf1, wf2, bf2, g2, b2]

    def _full_spec(a):
        nd = a.ndim
        return pl.BlockSpec(a.shape, lambda bi, _nd=nd: (0,) * _nd)

    x_spec = pl.BlockSpec((1, S, H), lambda bi: (bi, 0, 0))
    return pl.pallas_call(
        functools.partial(_encoder_layer_kernel, num_head=num_head, eps=eps),
        grid=(B,),
        in_specs=[x_spec] + [_full_spec(a) for a in weights],
        out_specs=x_spec,
        out_shape=jax.ShapeDtypeStruct((B, S, H), x.dtype),
        compiler_params=pltpu.CompilerParams(
            dimension_semantics=("parallel",),
            vmem_limit_bytes=32 * 1024 * 1024),   # safe on v5e/v6e/v7x
    )(x, *weights)


# ---------------------- fused head: final LN + fc0 + fc1 ----------------------

def _head_kernel(x_ref, g_ref, bln_ref, w0_ref, b0_ref, w1t_ref, b1_ref,
                 o_ref, *, eps):
    x = x_ref[...].astype(jnp.float32)                   # (M, H)
    x = _layernorm(x, g_ref[...], bln_ref[...], eps)     # encoder final norm
    h = jnp.dot(x, w0_ref[...], preferred_element_type=jnp.float32)
    h = jnp.maximum(h + b0_ref[...], 0.0)                # fc0 + ReLU
    # fc1 (H->1) written lane-dense as a (1, M) row instead of an (M, 1) column.
    y = jax.lax.dot_general(w1t_ref[...], h, (((1,), (1,)), ((), ())),
                            preferred_element_type=jnp.float32)
    y = y + b1_ref[...]
    o_ref[...] = y.astype(o_ref.dtype)


def head(x, params, eps=1e-5):
    M, _ = x.shape
    g, bln = params["final_ln"]
    w0, b0 = params["fc0"]
    w1t, b1 = params["fc1"]
    return pl.pallas_call(
        functools.partial(_head_kernel, eps=eps),
        out_shape=jax.ShapeDtypeStruct((1, M), x.dtype),
    )(x, g, bln, w0, b0, w1t, b1)


# --------------------------- parameters (synthetic) ---------------------------

def _dense_init(key, fan_in, fan_out):
    # Deterministic, PyTorch-Linear-style uniform(-1/sqrt(fan_in), 1/sqrt(fan_in)).
    k1, k2 = jax.random.split(key)
    bound = 1.0 / math.sqrt(fan_in)
    w = jax.random.uniform(k1, (fan_in, fan_out), jnp.float32, -bound, bound)
    b = jax.random.uniform(k2, (1, fan_out), jnp.float32, -bound, bound)
    return w, b


def init_params(key, num_input_features, h_model, num_head, num_layers,
                dim_feedforward):
    keys = jax.random.split(key, 3 + num_layers)
    ones = jnp.ones((1, h_model), jnp.float32)
    zeros = jnp.zeros((1, h_model), jnp.float32)
    params = {"emb": _dense_init(keys[0], num_input_features, h_model)}
    layers = []
    for l in range(num_layers):
        ks = jax.random.split(keys[1 + l], 6)
        wq, bq = _dense_init(ks[0], h_model, h_model)
        wk, bk = _dense_init(ks[1], h_model, h_model)
        wv, bv = _dense_init(ks[2], h_model, h_model)
        layers.append({
            # Fused QKV projection weights: (H, 3H) / (1, 3H).
            "wqkv": jnp.concatenate([wq, wk, wv], axis=1),
            "bqkv": jnp.concatenate([bq, bk, bv], axis=1),
            "wo": _dense_init(ks[3], h_model, h_model),
            "ff1": _dense_init(ks[4], h_model, dim_feedforward),
            "ff2": _dense_init(ks[5], dim_feedforward, h_model),
            "ln1": (ones, zeros),
            "ln2": (ones, zeros),
        })
    params["layers"] = layers
    params["final_ln"] = (ones, zeros)
    params["fc0"] = _dense_init(keys[1 + num_layers], h_model, h_model)
    w1, b1 = _dense_init(keys[2 + num_layers], h_model, 1)
    params["fc1"] = (w1.T, b1.reshape(1, 1))   # stored transposed: (1, H), (1, 1)
    return params


# ------------------------------- forward pass -------------------------------

def net_attention_forward(params, objects_features, num_head):
    # objects_features: (B, S, F) float32  (stack of state.ObjectsFeatures)
    B, S, F = objects_features.shape
    H = params["emb"][0].shape[1]

    x = linear(objects_features.reshape(B * S, F), *params["emb"])  # (B*S, H)
    x = x.reshape(B, S, H)

    for layer in params["layers"]:
        x = encoder_layer(x, layer, num_head)                       # fused layer

    qvals = head(x.reshape(B * S, H), params)                       # (1, B*S)
    return qvals.reshape(B, S)


# ----------------------------------- main -----------------------------------

if __name__ == "__main__":
    # Small shapes consistent with the module (F=5 input features; scaled-down
    # h_model / heads / ffn / layers for a quick synthetic run).
    B, S, F = 2, 8, 5
    H, NH, FF, L = 32, 4, 128, 2

    key = jax.random.PRNGKey(0)
    kp, kx = jax.random.split(key)
    params = init_params(kp, F, H, NH, L, FF)
    objects_features = jax.random.normal(kx, (B, S, F), jnp.float32)

    fwd = jax.jit(functools.partial(net_attention_forward, num_head=NH))
    out = fwd(params, objects_features)
    out = jax.block_until_ready(out)
    assert out.shape == (B, S), out.shape
    assert bool(jnp.all(jnp.isfinite(out)))
    print("KERNEL_OK")
</pallas_src>

<mosaic_0001>
module attributes {stable_mosaic.version = 11 : i64} {
  func.func @_encoder_layer_kernel(%arg0: i32, %arg1: memref<1x8x32xf32, #tpu.memory_space<vmem>>, %arg2: memref<32x96xf32, #tpu.memory_space<vmem>>, %arg3: memref<1x96xf32, #tpu.memory_space<vmem>>, %arg4: memref<32x32xf32, #tpu.memory_space<vmem>>, %arg5: memref<1x32xf32, #tpu.memory_space<vmem>>, %arg6: memref<1x32xf32, #tpu.memory_space<vmem>>, %arg7: memref<1x32xf32, #tpu.memory_space<vmem>>, %arg8: memref<32x128xf32, #tpu.memory_space<vmem>>, %arg9: memref<1x128xf32, #tpu.memory_space<vmem>>, %arg10: memref<128x32xf32, #tpu.memory_space<vmem>>, %arg11: memref<1x32xf32, #tpu.memory_space<vmem>>, %arg12: memref<1x32xf32, #tpu.memory_space<vmem>>, %arg13: memref<1x32xf32, #tpu.memory_space<vmem>>, %arg14: memref<1x8x32xf32, #tpu.memory_space<vmem>>) attributes {dimension_semantics = [#tpu.dimension_semantics<parallel>], iteration_bounds = array<i64: 2>, scalar_prefetch = 0 : i64, scratch_operands = 0 : i64, tpu.core_type = #tpu.core_type<tc>, window_params = [{transform_indices = @transform_0, window_bounds = array<i64: 1, 8, 32>}, {pipeline_mode = #tpu.pipeline_mode<synchronous>, transform_indices = @transform_1, window_bounds = array<i64: 32, 96>}, {pipeline_mode = #tpu.pipeline_mode<synchronous>, transform_indices = @transform_2, window_bounds = array<i64: 1, 96>}, {pipeline_mode = #tpu.pipeline_mode<synchronous>, transform_indices = @transform_3, window_bounds = array<i64: 32, 32>}, {pipeline_mode = #tpu.pipeline_mode<synchronous>, transform_indices = @transform_4, window_bounds = array<i64: 1, 32>}, {pipeline_mode = #tpu.pipeline_mode<synchronous>, transform_indices = @transform_5, window_bounds = array<i64: 1, 32>}, {pipeline_mode = #tpu.pipeline_mode<synchronous>, transform_indices = @transform_6, window_bounds = array<i64: 1, 32>}, {pipeline_mode = #tpu.pipeline_mode<synchronous>, transform_indices = @transform_7, window_bounds = array<i64: 32, 128>}, {pipeline_mode = #tpu.pipeline_mode<synchronous>, transform_indices = @transform_8, window_bounds = array<i64: 1, 128>}, {pipeline_mode = #tpu.pipeline_mode<synchronous>, transform_indices = @transform_9, window_bounds = array<i64: 128, 32>}, {pipeline_mode = #tpu.pipeline_mode<synchronous>, transform_indices = @transform_10, window_bounds = array<i64: 1, 32>}, {pipeline_mode = #tpu.pipeline_mode<synchronous>, transform_indices = @transform_11, window_bounds = array<i64: 1, 32>}, {pipeline_mode = #tpu.pipeline_mode<synchronous>, transform_indices = @transform_12, window_bounds = array<i64: 1, 32>}, {transform_indices = @transform_13, window_bounds = array<i64: 1, 8, 32>}]} {
    %c0 = arith.constant 0 : index
    %c0_0 = arith.constant 0 : index
    %c0_1 = arith.constant 0 : index
    %0 = vector.load %arg1[%c0, %c0_0, %c0_1] : memref<1x8x32xf32, #tpu.memory_space<vmem>>, vector<1x8x32xf32>
    %1 = vector.shape_cast %0 : vector<1x8x32xf32> to vector<8x32xf32>
    %c0_2 = arith.constant 0 : index
    %c0_3 = arith.constant 0 : index
    %2 = vector.load %arg2[%c0_2, %c0_3] : memref<32x96xf32, #tpu.memory_space<vmem>>, vector<32x96xf32>
    %cst = arith.constant dense<0.000000e+00> : vector<8x96xf32>
    %3 = tpu.matmul %1, %2, %cst {dimension_numbers = #tpu.dot_dimension_numbers<[1], [0], [0], [1], [0, 0, 1, 1], [], []>} : vector<8x32xf32>, vector<32x96xf32>, vector<8x96xf32> -> vector<8x96xf32>
    %c0_4 = arith.constant 0 : index
    %c0_5 = arith.constant 0 : index
    %4 = vector.load %arg3[%c0_4, %c0_5] : memref<1x96xf32, #tpu.memory_space<vmem>>, vector<1x96xf32>
    %5 = vector.broadcast %4 : vector<1x96xf32> to vector<8x96xf32>
    %6 = arith.addf %3, %5 : vector<8x96xf32>
    %7 = vector.extract_strided_slice %6 {offsets = [0, 0], sizes = [8, 8], strides = [1, 1]} : vector<8x96xf32> to vector<8x8xf32>
    %8 = vector.extract_strided_slice %6 {offsets = [0, 32], sizes = [8, 8], strides = [1, 1]} : vector<8x96xf32> to vector<8x8xf32>
    %9 = vector.extract_strided_slice %6 {offsets = [0, 64], sizes = [8, 8], strides = [1, 1]} : vector<8x96xf32> to vector<8x8xf32>
    %cst_6 = arith.constant dense<0.000000e+00> : vector<8x8xf32>
    %10 = tpu.matmul %7, %8, %cst_6 {dimension_numbers = #tpu.dot_dimension_numbers<[1], [1], [0], [0], [0, 0, 1, 0], [], []>} : vector<8x8xf32>, vector<8x8xf32>, vector<8x8xf32> -> vector<8x8xf32>
    %cst_7 = arith.constant 0.353553385 : f32
    %11 = vector.broadcast %cst_7 : f32 to vector<8x8xf32>
    %12 = arith.mulf %10, %11 : vector<8x8xf32>
    %cst_8 = arith.constant dense<0xFF800000> : vector<8xf32>
    %13 = vector.multi_reduction <maximumf>, %12, %cst_8 [1] : vector<8x8xf32> to vector<8xf32>
    %14 = vector.shape_cast %13 : vector<8xf32> to vector<8x1xf32>
    %15 = vector.broadcast %14 : vector<8x1xf32> to vector<8x8xf32>
    %16 = arith.subf %12, %15 : vector<8x8xf32>
    %17 = math.exp %16 : vector<8x8xf32>
    %cst_9 = arith.constant dense<0.000000e+00> : vector<8xf32>
    %18 = vector.multi_reduction <add>, %17, %cst_9 [1] : vector<8x8xf32> to vector<8xf32>
    %19 = vector.shape_cast %18 : vector<8xf32> to vector<8x1xf32>
    %20 = tpu.reciprocal %19 {approx = true} : vector<8x1xf32> -> vector<8x1xf32>
    %21 = vector.broadcast %20 : vector<8x1xf32> to vector<8x8xf32>
    %22 = arith.mulf %17, %21 : vector<8x8xf32>
    %cst_10 = arith.constant dense<0.000000e+00> : vector<8x8xf32>
    %23 = tpu.matmul %22, %9, %cst_10 {dimension_numbers = #tpu.dot_dimension_numbers<[1], [0], [0], [1], [0, 0, 1, 1], [], []>} : vector<8x8xf32>, vector<8x8xf32>, vector<8x8xf32> -> vector<8x8xf32>
    %24 = vector.extract_strided_slice %6 {offsets = [0, 8], sizes = [8, 8], strides = [1, 1]} : vector<8x96xf32> to vector<8x8xf32>
    %25 = vector.extract_strided_slice %6 {offsets = [0, 40], sizes = [8, 8], strides = [1, 1]} : vector<8x96xf32> to vector<8x8xf32>
    %26 = vector.extract_strided_slice %6 {offsets = [0, 72], sizes = [8, 8], strides = [1, 1]} : vector<8x96xf32> to vector<8x8xf32>
    %cst_11 = arith.constant dense<0.000000e+00> : vector<8x8xf32>
    %27 = tpu.matmul %24, %25, %cst_11 {dimension_numbers = #tpu.dot_dimension_numbers<[1], [1], [0], [0], [0, 0, 1, 0], [], []>} : vector<8x8xf32>, vector<8x8xf32>, vector<8x8xf32> -> vector<8x8xf32>
    %cst_12 = arith.constant 0.353553385 : f32
    %28 = vector.broadcast %cst_12 : f32 to vector<8x8xf32>
    %29 = arith.mulf %27, %28 : vector<8x8xf32>
    %cst_13 = arith.constant dense<0xFF800000> : vector<8xf32>
    %30 = vector.multi_reduction <maximumf>, %29, %cst_13 [1] : vector<8x8xf32> to vector<8xf32>
    %31 = vector.shape_cast %30 : vector<8xf32> to vector<8x1xf32>
    %32 = vector.broadcast %31 : vector<8x1xf32> to vector<8x8xf32>
    %33 = arith.subf %29, %32 : vector<8x8xf32>
    %34 = math.exp %33 : vector<8x8xf32>
    %cst_14 = arith.constant dense<0.000000e+00> : vector<8xf32>
    %35 = vector.multi_reduction <add>, %34, %cst_14 [1] : vector<8x8xf32> to vector<8xf32>
    %36 = vector.shape_cast %35 : vector<8xf32> to vector<8x1xf32>
    %37 = tpu.reciprocal %36 {approx = true} : vector<8x1xf32> -> vector<8x1xf32>
    %38 = vector.broadcast %37 : vector<8x1xf32> to vector<8x8xf32>
    %39 = arith.mulf %34, %38 : vector<8x8xf32>
    %cst_15 = arith.constant dense<0.000000e+00> : vector<8x8xf32>
    %40 = tpu.matmul %39, %26, %cst_15 {dimension_numbers = #tpu.dot_dimension_numbers<[1], [0], [0], [1], [0, 0, 1, 1], [], []>} : vector<8x8xf32>, vector<8x8xf32>, vector<8x8xf32> -> vector<8x8xf32>
    %41 = vector.extract_strided_slice %6 {offsets = [0, 16], sizes = [8, 8], strides = [1, 1]} : vector<8x96xf32> to vector<8x8xf32>
    %42 = vector.extract_strided_slice %6 {offsets = [0, 48], sizes = [8, 8], strides = [1, 1]} : vector<8x96xf32> to vector<8x8xf32>
    %43 = vector.extract_strided_slice %6 {offsets = [0, 80], sizes = [8, 8], strides = [1, 1]} : vector<8x96xf32> to vector<8x8xf32>
    %cst_16 = arith.constant dense<0.000000e+00> : vector<8x8xf32>
    %44 = tpu.matmul %41, %42, %cst_16 {dimension_numbers = #tpu.dot_dimension_numbers<[1], [1], [0], [0], [0, 0, 1, 0], [], []>} : vector<8x8xf32>, vector<8x8xf32>, vector<8x8xf32> -> vector<8x8xf32>
    %cst_17 = arith.constant 0.353553385 : f32
    %45 = vector.broadcast %cst_17 : f32 to vector<8x8xf32>
    %46 = arith.mulf %44, %45 : vector<8x8xf32>
    %cst_18 = arith.constant dense<0xFF800000> : vector<8xf32>
    %47 = vector.multi_reduction <maximumf>, %46, %cst_18 [1] : vector<8x8xf32> to vector<8xf32>
    %48 = vector.shape_cast %47 : vector<8xf32> to vector<8x1xf32>
    %49 = vector.broadcast %48 : vector<8x1xf32> to vector<8x8xf32>
    %50 = arith.subf %46, %49 : vector<8x8xf32>
    %51 = math.exp %50 : vector<8x8xf32>
    %cst_19 = arith.constant dense<0.000000e+00> : vector<8xf32>
    %52 = vector.multi_reduction <add>, %51, %cst_19 [1] : vector<8x8xf32> to vector<8xf32>
    %53 = vector.shape_cast %52 : vector<8xf32> to vector<8x1xf32>
    %54 = tpu.reciprocal %53 {approx = true} : vector<8x1xf32> -> vector<8x1xf32>
    %55 = vector.broadcast %54 : vector<8x1xf32> to vector<8x8xf32>
    %56 = arith.mulf %51, %55 : vector<8x8xf32>
    %cst_20 = arith.constant dense<0.000000e+00> : vector<8x8xf32>
    %57 = tpu.matmul %56, %43, %cst_20 {dimension_numbers = #tpu.dot_dimension_numbers<[1], [0], [0], [1], [0, 0, 1, 1], [], []>} : vector<8x8xf32>, vector<8x8xf32>, vector<8x8xf32> -> vector<8x8xf32>
    %58 = vector.extract_strided_slice %6 {offsets = [0, 24], sizes = [8, 8], strides = [1, 1]} : vector<8x96xf32> to vector<8x8xf32>
    %59 = vector.extract_strided_slice %6 {offsets = [0, 56], sizes = [8, 8], strides = [1, 1]} : vector<8x96xf32> to vector<8x8xf32>
    %60 = vector.extract_strided_slice %6 {offsets = [0, 88], sizes = [8, 8], strides = [1, 1]} : vector<8x96xf32> to vector<8x8xf32>
    %cst_21 = arith.constant dense<0.000000e+00> : vector<8x8xf32>
    %61 = tpu.matmul %58, %59, %cst_21 {dimension_numbers = #tpu.dot_dimension_numbers<[1], [1], [0], [0], [0, 0, 1, 0], [], []>} : vector<8x8xf32>, vector<8x8xf32>, vector<8x8xf32> -> vector<8x8xf32>
    %cst_22 = arith.constant 0.353553385 : f32
    %62 = vector.broadcast %cst_22 : f32 to vector<8x8xf32>
    %63 = arith.mulf %61, %62 : vector<8x8xf32>
    %cst_23 = arith.constant dense<0xFF800000> : vector<8xf32>
    %64 = vector.multi_reduction <maximumf>, %63, %cst_23 [1] : vector<8x8xf32> to vector<8xf32>
    %65 = vector.shape_cast %64 : vector<8xf32> to vector<8x1xf32>
    %66 = vector.broadcast %65 : vector<8x1xf32> to vector<8x8xf32>
    %67 = arith.subf %63, %66 : vector<8x8xf32>
    %68 = math.exp %67 : vector<8x8xf32>
    %cst_24 = arith.constant dense<0.000000e+00> : vector<8xf32>
    %69 = vector.multi_reduction <add>, %68, %cst_24 [1] : vector<8x8xf32> to vector<8xf32>
    %70 = vector.shape_cast %69 : vector<8xf32> to vector<8x1xf32>
    %71 = tpu.reciprocal %70 {approx = true} : vector<8x1xf32> -> vector<8x1xf32>
    %72 = vector.broadcast %71 : vector<8x1xf32> to vector<8x8xf32>
    %73 = arith.mulf %68, %72 : vector<8x8xf32>
    %cst_25 = arith.constant dense<0.000000e+00> : vector<8x8xf32>
    %74 = tpu.matmul %73, %60, %cst_25 {dimension_numbers = #tpu.dot_dimension_numbers<[1], [0], [0], [1], [0, 0, 1, 1], [], []>} : vector<8x8xf32>, vector<8x8xf32>, vector<8x8xf32> -> vector<8x8xf32>
    %75 = tpu.concatenate %23, %40, %57, %74 in 1 : vector<8x8xf32>, vector<8x8xf32>, vector<8x8xf32>, vector<8x8xf32> -> vector<8x32xf32>
    %c0_26 = arith.constant 0 : index
    %c0_27 = arith.constant 0 : index
    %76 = vector.load %arg4[%c0_26, %c0_27] : memref<32x32xf32, #tpu.memory_space<vmem>>, vector<32x32xf32>
    %cst_28 = arith.constant dense<0.000000e+00> : vector<8x32xf32>
    %77 = tpu.matmul %75, %76, %cst_28 {dimension_numbers = #tpu.dot_dimension_numbers<[1], [0], [0], [1], [0, 0, 1, 1], [], []>} : vector<8x32xf32>, vector<32x32xf32>, vector<8x32xf32> -> vector<8x32xf32>
    %c0_29 = arith.constant 0 : index
    %c0_30 = arith.constant 0 : index
    %78 = vector.load %arg5[%c0_29, %c0_30] : memref<1x32xf32, #tpu.memory_space<vmem>>, vector<1x32xf32>
    %79 = vector.broadcast %78 : vector<1x32xf32> to vector<8x32xf32>
    %80 = arith.addf %77, %79 : vector<8x32xf32>
    %81 = arith.addf %1, %80 : vector<8x32xf32>
    %c0_31 = arith.constant 0 : index
    %c0_32 = arith.constant 0 : index
    %82 = vector.load %arg6[%c0_31, %c0_32] : memref<1x32xf32, #tpu.memory_space<vmem>>, vector<1x32xf32>
    %c0_33 = arith.constant 0 : index
    %c0_34 = arith.constant 0 : index
    %83 = vector.load %arg7[%c0_33, %c0_34] : memref<1x32xf32, #tpu.memory_space<vmem>>, vector<1x32xf32>
    %cst_35 = arith.constant dense<0.000000e+00> : vector<8xf32>
    %84 = vector.multi_reduction <add>, %81, %cst_35 [1] : vector<8x32xf32> to vector<8xf32>
    %85 = vector.shape_cast %84 : vector<8xf32> to vector<8x1xf32>
    %cst_36 = arith.constant 3.200000e+01 : f32
    %86 = vector.broadcast %cst_36 : f32 to vector<8x1xf32>
    %87 = arith.divf %85, %86 : vector<8x1xf32>
    %88 = vector.broadcast %87 : vector<8x1xf32> to vector<8x32xf32>
    %89 = arith.subf %81, %88 : vector<8x32xf32>
    %90 = arith.mulf %89, %89 : vector<8x32xf32>
    %cst_37 = arith.constant dense<0.000000e+00> : vector<8xf32>
    %91 = vector.multi_reduction <add>, %90, %cst_37 [1] : vector<8x32xf32> to vector<8xf32>
    %92 = vector.shape_cast %91 : vector<8xf32> to vector<8x1xf32>
    %cst_38 = arith.constant 3.200000e+01 : f32
    %93 = vector.broadcast %cst_38 : f32 to vector<8x1xf32>
    %94 = arith.divf %92, %93 : vector<8x1xf32>
    %95 = vector.broadcast %87 : vector<8x1xf32> to vector<8x32xf32>
    %96 = arith.subf %81, %95 : vector<8x32xf32>
    %cst_39 = arith.constant 9.99999974E-6 : f32
    %97 = vector.broadcast %cst_39 : f32 to vector<8x1xf32>
    %98 = arith.addf %94, %97 : vector<8x1xf32>
    %99 = math.rsqrt %98 : vector<8x1xf32>
    %100 = vector.broadcast %99 : vector<8x1xf32> to vector<8x32xf32>
    %101 = arith.mulf %96, %100 : vector<8x32xf32>
    %102 = vector.broadcast %82 : vector<1x32xf32> to vector<8x32xf32>
    %103 = arith.mulf %101, %102 : vector<8x32xf32>
    %104 = vector.broadcast %83 : vector<1x32xf32> to vector<8x32xf32>
    %105 = arith.addf %103, %104 : vector<8x32xf32>
    %c0_40 = arith.constant 0 : index
    %c0_41 = arith.constant 0 : index
    %106 = vector.load %arg8[%c0_40, %c0_41] : memref<32x128xf32, #tpu.memory_space<vmem>>, vector<32x128xf32>
    %cst_42 = arith.constant dense<0.000000e+00> : vector<8x128xf32>
    %107 = tpu.matmul %105, %106, %cst_42 {dimension_numbers = #tpu.dot_dimension_numbers<[1], [0], [0], [1], [0, 0, 1, 1], [], []>} : vector<8x32xf32>, vector<32x128xf32>, vector<8x128xf32> -> vector<8x128xf32>
    %c0_43 = arith.constant 0 : index
    %c0_44 = arith.constant 0 : index
    %108 = vector.load %arg9[%c0_43, %c0_44] : memref<1x128xf32, #tpu.memory_space<vmem>>, vector<1x128xf32>
    %109 = vector.broadcast %108 : vector<1x128xf32> to vector<8x128xf32>
    %110 = arith.addf %107, %109 : vector<8x128xf32>
    %cst_45 = arith.constant 0.000000e+00 : f32
    %111 = vector.broadcast %cst_45 : f32 to vector<8x128xf32>
    %112 = arith.maximumf %110, %111 : vector<8x128xf32>
    %c0_46 = arith.constant 0 : index
    %c0_47 = arith.constant 0 : index
    %113 = vector.load %arg10[%c0_46, %c0_47] : memref<128x32xf32, #tpu.memory_space<vmem>>, vector<128x32xf32>
    %cst_48 = arith.constant dense<0.000000e+00> : vector<8x32xf32>
    %114 = tpu.matmul %112, %113, %cst_48 {dimension_numbers = #tpu.dot_dimension_numbers<[1], [0], [0], [1], [0, 0, 1, 1], [], []>} : vector<8x128xf32>, vector<128x32xf32>, vector<8x32xf32> -> vector<8x32xf32>
    %c0_49 = arith.constant 0 : index
    %c0_50 = arith.constant 0 : index
    %115 = vector.load %arg11[%c0_49, %c0_50] : memref<1x32xf32, #tpu.memory_space<vmem>>, vector<1x32xf32>
    %116 = vector.broadcast %115 : vector<1x32xf32> to vector<8x32xf32>
    %117 = arith.addf %114, %116 : vector<8x32xf32>
    %118 = arith.addf %105, %117 : vector<8x32xf32>
    %c0_51 = arith.constant 0 : index
    %c0_52 = arith.constant 0 : index
    %119 = vector.load %arg12[%c0_51, %c0_52] : memref<1x32xf32, #tpu.memory_space<vmem>>, vector<1x32xf32>
    %c0_53 = arith.constant 0 : index
    %c0_54 = arith.constant 0 : index
    %120 = vector.load %arg13[%c0_53, %c0_54] : memref<1x32xf32, #tpu.memory_space<vmem>>, vector<1x32xf32>
    %cst_55 = arith.constant dense<0.000000e+00> : vector<8xf32>
    %121 = vector.multi_reduction <add>, %118, %cst_55 [1] : vector<8x32xf32> to vector<8xf32>
    %122 = vector.shape_cast %121 : vector<8xf32> to vector<8x1xf32>
    %cst_56 = arith.constant 3.200000e+01 : f32
    %123 = vector.broadcast %cst_56 : f32 to vector<8x1xf32>
    %124 = arith.divf %122, %123 : vector<8x1xf32>
    %125 = vector.broadcast %124 : vector<8x1xf32> to vector<8x32xf32>
    %126 = arith.subf %118, %125 : vector<8x32xf32>
    %127 = arith.mulf %126, %126 : vector<8x32xf32>
    %cst_57 = arith.constant dense<0.000000e+00> : vector<8xf32>
    %128 = vector.multi_reduction <add>, %127, %cst_57 [1] : vector<8x32xf32> to vector<8xf32>
    %129 = vector.shape_cast %128 : vector<8xf32> to vector<8x1xf32>
    %cst_58 = arith.constant 3.200000e+01 : f32
    %130 = vector.broadcast %cst_58 : f32 to vector<8x1xf32>
    %131 = arith.divf %129, %130 : vector<8x1xf32>
    %132 = vector.broadcast %124 : vector<8x1xf32> to vector<8x32xf32>
    %133 = arith.subf %118, %132 : vector<8x32xf32>
    %cst_59 = arith.constant 9.99999974E-6 : f32
    %134 = vector.broadcast %cst_59 : f32 to vector<8x1xf32>
    %135 = arith.addf %131, %134 : vector<8x1xf32>
    %136 = math.rsqrt %135 : vector<8x1xf32>
    %137 = vector.broadcast %136 : vector<8x1xf32> to vector<8x32xf32>
    %138 = arith.mulf %133, %137 : vector<8x32xf32>
    %139 = vector.broadcast %119 : vector<1x32xf32> to vector<8x32xf32>
    %140 = arith.mulf %138, %139 : vector<8x32xf32>
    %141 = vector.broadcast %120 : vector<1x32xf32> to vector<8x32xf32>
    %142 = arith.addf %140, %141 : vector<8x32xf32>
    %c0_60 = arith.constant 0 : index
    %c0_61 = arith.constant 0 : index
    %c0_62 = arith.constant 0 : index
    %143 = vector.load %arg14[%c0_60, %c0_61, %c0_62] : memref<1x8x32xf32, #tpu.memory_space<vmem>>, vector<1x8x32xf32>
    %144 = vector.shape_cast %143 : vector<1x8x32xf32> to vector<8x32xf32>
    %145 = vector.shape_cast %142 : vector<8x32xf32> to vector<1x8x32xf32>
    tpu.vector_store %arg14[%c0_60, %c0_61, %c0_62], %145 {strides = array<i32>} : memref<1x8x32xf32, #tpu.memory_space<vmem>>, vector<1x8x32xf32>,
    return
  }
  func.func @transform_0(%arg0: i32) -> (i32, i32, i32) {
    %c0_i32 = arith.constant 0 : i32
    %c0_i32_0 = arith.constant 0 : i32
    %c0_i32_1 = arith.constant 0 : i32
    return %arg0, %c0_i32, %c0_i32_0 : i32, i32, i32
  }
  func.func @transform_1(%arg0: i32) -> (i32, i32) {
    %c0_i32 = arith.constant 0 : i32
    %c0_i32_0 = arith.constant 0 : i32
    %c0_i32_1 = arith.constant 0 : i32
    return %c0_i32, %c0_i32_0 : i32, i32
  }
  func.func @transform_2(%arg0: i32) -> (i32, i32) {
    %c0_i32 = arith.constant 0 : i32
    %c0_i32_0 = arith.constant 0 : i32
    %c0_i32_1 = arith.constant 0 : i32
    return %c0_i32, %c0_i32_0 : i32, i32
  }
  func.func @transform_3(%arg0: i32) -> (i32, i32) {
    %c0_i32 = arith.constant 0 : i32
    %c0_i32_0 = arith.constant 0 : i32
    %c0_i32_1 = arith.constant 0 : i32
    return %c0_i32, %c0_i32_0 : i32, i32
  }
  func.func @transform_4(%arg0: i32) -> (i32, i32) {
    %c0_i32 = arith.constant 0 : i32
    %c0_i32_0 = arith.constant 0 : i32
    %c0_i32_1 = arith.constant 0 : i32
    return %c0_i32, %c0_i32_0 : i32, i32
  }
  func.func @transform_5(%arg0: i32) -> (i32, i32) {
    %c0_i32 = arith.constant 0 : i32
    %c0_i32_0 = arith.constant 0 : i32
    %c0_i32_1 = arith.constant 0 : i32
    return %c0_i32, %c0_i32_0 : i32, i32
  }
  func.func @transform_6(%arg0: i32) -> (i32, i32) {
    %c0_i32 = arith.constant 0 : i32
    %c0_i32_0 = arith.constant 0 : i32
    %c0_i32_1 = arith.constant 0 : i32
    return %c0_i32, %c0_i32_0 : i32, i32
  }
  func.func @transform_7(%arg0: i32) -> (i32, i32) {
    %c0_i32 = arith.constant 0 : i32
    %c0_i32_0 = arith.constant 0 : i32
    %c0_i32_1 = arith.constant 0 : i32
    return %c0_i32, %c0_i32_0 : i32, i32
  }
  func.func @transform_8(%arg0: i32) -> (i32, i32) {
    %c0_i32 = arith.constant 0 : i32
    %c0_i32_0 = arith.constant 0 : i32
    %c0_i32_1 = arith.constant 0 : i32
    return %c0_i32, %c0_i32_0 : i32, i32
  }
  func.func @transform_9(%arg0: i32) -> (i32, i32) {
    %c0_i32 = arith.constant 0 : i32
    %c0_i32_0 = arith.constant 0 : i32
    %c0_i32_1 = arith.constant 0 : i32
    return %c0_i32, %c0_i32_0 : i32, i32
  }
  func.func @transform_10(%arg0: i32) -> (i32, i32) {
    %c0_i32 = arith.constant 0 : i32
    %c0_i32_0 = arith.constant 0 : i32
    %c0_i32_1 = arith.constant 0 : i32
    return %c0_i32, %c0_i32_0 : i32, i32
  }
  func.func @transform_11(%arg0: i32) -> (i32, i32) {
    %c0_i32 = arith.constant 0 : i32
    %c0_i32_0 = arith.constant 0 : i32
    %c0_i32_1 = arith.constant 0 : i32
    return %c0_i32, %c0_i32_0 : i32, i32
  }
  func.func @transform_12(%arg0: i32) -> (i32, i32) {
    %c0_i32 = arith.constant 0 : i32
    %c0_i32_0 = arith.constant 0 : i32
    %c0_i32_1 = arith.constant 0 : i32
    return %c0_i32, %c0_i32_0 : i32, i32
  }
  func.func @transform_13(%arg0: i32) -> (i32, i32, i32) {
    %c0_i32 = arith.constant 0 : i32
    %c0_i32_0 = arith.constant 0 : i32
    %c0_i32_1 = arith.constant 0 : i32
    return %arg0, %c0_i32, %c0_i32_0 : i32, i32, i32
  }
}

module attributes {stable_mosaic.version = 11 : i64} {
  func.func @_linear_kernel(%arg0: i32, %arg1: memref<16x5xf32, #tpu.memory_space<vmem>>, %arg2: memref<5x32xf32, #tpu.memory_space<vmem>>, %arg3: memref<1x32xf32, #tpu.memory_space<vmem>>, %arg4: memref<16x32xf32, #tpu.memory_space<vmem>>) attributes {dimension_semantics = [#tpu.dimension_semantics<parallel>], iteration_bounds = array<i64: 1>, scalar_prefetch = 0 : i64, scratch_operands = 0 : i64, tpu.core_type = #tpu.core_type<tc>, window_params = [{transform_indices = @transform_0, window_bounds = array<i64: 16, 5>}, {pipeline_mode = #tpu.pipeline_mode<synchronous>, transform_indices = @transform_1, window_bounds = array<i64: 5, 32>}, {pipeline_mode = #tpu.pipeline_mode<synchronous>, transform_indices = @transform_2, window_bounds = array<i64: 1, 32>}, {transform_indices = @transform_3, window_bounds = array<i64: 16, 32>}]} {
    %c0 = arith.constant 0 : index
    %c0_0 = arith.constant 0 : index
    %0 = vector.load %arg1[%c0, %c0_0] : memref<16x5xf32, #tpu.memory_space<vmem>>, vector<16x5xf32>
    %c0_1 = arith.constant 0 : index
    %c0_2 = arith.constant 0 : index
    %1 = vector.load %arg2[%c0_1, %c0_2] : memref<5x32xf32, #tpu.memory_space<vmem>>, vector<5x32xf32>
    %cst = arith.constant dense<0.000000e+00> : vector<16x32xf32>
    %2 = tpu.matmul %0, %1, %cst {dimension_numbers = #tpu.dot_dimension_numbers<[1], [0], [0], [1], [0, 0, 1, 1], [], []>} : vector<16x5xf32>, vector<5x32xf32>, vector<16x32xf32> -> vector<16x32xf32>
    %c0_3 = arith.constant 0 : index
    %c0_4 = arith.constant 0 : index
    %3 = vector.load %arg3[%c0_3, %c0_4] : memref<1x32xf32, #tpu.memory_space<vmem>>, vector<1x32xf32>
    %4 = vector.broadcast %3 : vector<1x32xf32> to vector<16x32xf32>
    %5 = arith.addf %2, %4 : vector<16x32xf32>
    %c0_5 = arith.constant 0 : index
    %c0_6 = arith.constant 0 : index
    %6 = vector.load %arg4[%c0_5, %c0_6] : memref<16x32xf32, #tpu.memory_space<vmem>>, vector<16x32xf32>
    tpu.vector_store %arg4[%c0_5, %c0_6], %5 {strides = array<i32>} : memref<16x32xf32, #tpu.memory_space<vmem>>, vector<16x32xf32>,
    return
  }
  func.func @transform_0(%arg0: i32) -> (i32, i32) {
    %c0_i32 = arith.constant 0 : i32
    %c0_i32_0 = arith.constant 0 : i32
    return %arg0, %c0_i32 : i32, i32
  }
  func.func @transform_1(%arg0: i32) -> (i32, i32) {
    %c0_i32 = arith.constant 0 : i32
    %c0_i32_0 = arith.constant 0 : i32
    %c0_i32_1 = arith.constant 0 : i32
    return %c0_i32, %c0_i32_0 : i32, i32
  }
  func.func @transform_2(%arg0: i32) -> (i32, i32) {
    %c0_i32 = arith.constant 0 : i32
    %c0_i32_0 = arith.constant 0 : i32
    %c0_i32_1 = arith.constant 0 : i32
    return %c0_i32, %c0_i32_0 : i32, i32
  }
  func.func @transform_3(%arg0: i32) -> (i32, i32) {
    %c0_i32 = arith.constant 0 : i32
    %c0_i32_0 = arith.constant 0 : i32
    return %arg0, %c0_i32 : i32, i32
  }
}

module attributes {stable_mosaic.version = 11 : i64} {
  func.func @_head_kernel(%arg0: memref<16x32xf32, #tpu.memory_space<vmem>>, %arg1: memref<1x32xf32, #tpu.memory_space<vmem>>, %arg2: memref<1x32xf32, #tpu.memory_space<vmem>>, %arg3: memref<32x32xf32, #tpu.memory_space<vmem>>, %arg4: memref<1x32xf32, #tpu.memory_space<vmem>>, %arg5: memref<1x32xf32, #tpu.memory_space<vmem>>, %arg6: memref<1x1xf32, #tpu.memory_space<vmem>>, %arg7: memref<1x16xf32, #tpu.memory_space<vmem>>) attributes {dimension_semantics = [], scalar_prefetch = 0 : i64, scratch_operands = 0 : i64, tpu.core_type = #tpu.core_type<tc>} {
    %c0 = arith.constant 0 : index
    %c0_0 = arith.constant 0 : index
    %0 = vector.load %arg0[%c0, %c0_0] : memref<16x32xf32, #tpu.memory_space<vmem>>, vector<16x32xf32>
    %c0_1 = arith.constant 0 : index
    %c0_2 = arith.constant 0 : index
    %1 = vector.load %arg1[%c0_1, %c0_2] : memref<1x32xf32, #tpu.memory_space<vmem>>, vector<1x32xf32>
    %c0_3 = arith.constant 0 : index
    %c0_4 = arith.constant 0 : index
    %2 = vector.load %arg2[%c0_3, %c0_4] : memref<1x32xf32, #tpu.memory_space<vmem>>, vector<1x32xf32>
    %cst = arith.constant dense<0.000000e+00> : vector<16xf32>
    %3 = vector.multi_reduction <add>, %0, %cst [1] : vector<16x32xf32> to vector<16xf32>
    %4 = vector.shape_cast %3 : vector<16xf32> to vector<16x1xf32>
    %cst_5 = arith.constant 3.200000e+01 : f32
    %5 = vector.broadcast %cst_5 : f32 to vector<16x1xf32>
    %6 = arith.divf %4, %5 : vector<16x1xf32>
    %7 = vector.broadcast %6 : vector<16x1xf32> to vector<16x32xf32>
    %8 = arith.subf %0, %7 : vector<16x32xf32>
    %9 = arith.mulf %8, %8 : vector<16x32xf32>
    %cst_6 = arith.constant dense<0.000000e+00> : vector<16xf32>
    %10 = vector.multi_reduction <add>, %9, %cst_6 [1] : vector<16x32xf32> to vector<16xf32>
    %11 = vector.shape_cast %10 : vector<16xf32> to vector<16x1xf32>
    %cst_7 = arith.constant 3.200000e+01 : f32
    %12 = vector.broadcast %cst_7 : f32 to vector<16x1xf32>
    %13 = arith.divf %11, %12 : vector<16x1xf32>
    %14 = vector.broadcast %6 : vector<16x1xf32> to vector<16x32xf32>
    %15 = arith.subf %0, %14 : vector<16x32xf32>
    %cst_8 = arith.constant 9.99999974E-6 : f32
    %16 = vector.broadcast %cst_8 : f32 to vector<16x1xf32>
    %17 = arith.addf %13, %16 : vector<16x1xf32>
    %18 = math.rsqrt %17 : vector<16x1xf32>
    %19 = vector.broadcast %18 : vector<16x1xf32> to vector<16x32xf32>
    %20 = arith.mulf %15, %19 : vector<16x32xf32>
    %21 = vector.broadcast %1 : vector<1x32xf32> to vector<16x32xf32>
    %22 = arith.mulf %20, %21 : vector<16x32xf32>
    %23 = vector.broadcast %2 : vector<1x32xf32> to vector<16x32xf32>
    %24 = arith.addf %22, %23 : vector<16x32xf32>
    %c0_9 = arith.constant 0 : index
    %c0_10 = arith.constant 0 : index
    %25 = vector.load %arg3[%c0_9, %c0_10] : memref<32x32xf32, #tpu.memory_space<vmem>>, vector<32x32xf32>
    %cst_11 = arith.constant dense<0.000000e+00> : vector<16x32xf32>
    %26 = tpu.matmul %24, %25, %cst_11 {dimension_numbers = #tpu.dot_dimension_numbers<[1], [0], [0], [1], [0, 0, 1, 1], [], []>} : vector<16x32xf32>, vector<32x32xf32>, vector<16x32xf32> -> vector<16x32xf32>
    %c0_12 = arith.constant 0 : index
    %c0_13 = arith.constant 0 : index
    %27 = vector.load %arg4[%c0_12, %c0_13] : memref<1x32xf32, #tpu.memory_space<vmem>>, vector<1x32xf32>
    %28 = vector.broadcast %27 : vector<1x32xf32> to vector<16x32xf32>
    %29 = arith.addf %26, %28 : vector<16x32xf32>
    %cst_14 = arith.constant 0.000000e+00 : f32
    %30 = vector.broadcast %cst_14 : f32 to vector<16x32xf32>
    %31 = arith.maximumf %29, %30 : vector<16x32xf32>
    %c0_15 = arith.constant 0 : index
    %c0_16 = arith.constant 0 : index
    %32 = vector.load %arg5[%c0_15, %c0_16] : memref<1x32xf32, #tpu.memory_space<vmem>>, vector<1x32xf32>
    %cst_17 = arith.constant dense<0.000000e+00> : vector<1x16xf32>
    %33 = tpu.matmul %32, %31, %cst_17 {dimension_numbers = #tpu.dot_dimension_numbers<[1], [1], [0], [0], [0, 0, 1, 0], [], []>} : vector<1x32xf32>, vector<16x32xf32>, vector<1x16xf32> -> vector<1x16xf32>
    %c0_18 = arith.constant 0 : index
    %c0_19 = arith.constant 0 : index
    %34 = vector.load %arg6[%c0_18, %c0_19] : memref<1x1xf32, #tpu.memory_space<vmem>>, vector<1x1xf32>
    %35 = vector.broadcast %34 : vector<1x1xf32> to vector<1x16xf32>
    %36 = arith.addf %33, %35 : vector<1x16xf32>
    %c0_20 = arith.constant 0 : index
    %c0_21 = arith.constant 0 : index
    %37 = vector.load %arg7[%c0_20, %c0_21] : memref<1x16xf32, #tpu.memory_space<vmem>>, vector<1x16xf32>
    tpu.vector_store %arg7[%c0_20, %c0_21], %36 {strides = array<i32>} : memref<1x16xf32, #tpu.memory_space<vmem>>, vector<1x16xf32>,
    return
  }
}

</mosaic_0001>

<llo_original>
// kernel: net_attention_forward.4
$region0: #{net_attention_forward.4}
  #allocation0 [shape = 'u32[]', space=smem, size = 0x4, offset = 0x4, fixed_abs, tag = 'smem constant byte address 0x4 - core index']
  #allocation1 [shape = 'u32[144,128]{1,0:T(1,128)}', space=vmem, size = 0x12000, scoped, tag = 'internal scratch']
  %s0 = inlined_call_operand.vmem [shape: f32[16,5], index: 0, kind: input, shape index: {}]
  %s1 = inlined_call_operand.vmem [shape: f32[5,32], index: 1, kind: input, shape index: {}]
  %s2 = inlined_call_operand.vmem [shape: f32[1,32], index: 2, kind: input, shape index: {}]
  %s3 = inlined_call_operand.vmem [shape: f32[16,32], index: 3, kind: output, shape index: {}]
  %s4 = sld [smem:[#allocation0]]
  $region22: #{net_attention_forward.4} parent=0
    _
  %s6 = ssub.s32 1, %s4
  %s7 = scalar_select 0, %s6, %s4
  // Predicated region
  $region2: #{net_attention_forward.4} parent=0 // pred_check
    _
  $region3: #{net_attention_forward.4} parent=0 // pred_check_branch
    %9 = sbr.rel (0) target = $region5
  $region4: #{net_attention_forward.4} parent=0 // pred_region
    _
  $region5: #{net_attention_forward.4} parent=0 // pred_fallthru
    _
  // Predicated region
  $region6: #{net_attention_forward.4} parent=0 // pred_check
    _
  $region7: #{net_attention_forward.4} parent=0 // pred_check_branch
    %11 = sbr.rel (0) target = $region9
  $region8: #{net_attention_forward.4} parent=0 // pred_region
    _
  $region9: #{net_attention_forward.4} parent=0 // pred_fallthru
    _
  // Predicated region
  $region10: #{net_attention_forward.4} parent=0 // pred_check
    _
  $region11: #{net_attention_forward.4} parent=0 // pred_check_branch
    %13 = sbr.rel (0) target = $region13
  $region12: #{net_attention_forward.4} parent=0 // pred_region
    _
  $region13: #{net_attention_forward.4} parent=0 // pred_fallthru
    _
  %v14 = vld [vmem:[%s0] sm:$0xff]
  %v15 = vld [vmem:[%s0 + $0x8] sm:$0xff]
  %v16 = vld [vmem:[%s1] sm:$0x1f]
  %v17 = vld [vmem:[%s2] sm:$0x1]
  %v19 = vlaneseq
  %v20 = vshrl.u32 %v19, 7
  %v21 = vsub.s32 0, %v20
  %v22 = vrot.slane %v17, %v21
  %vm24 = vcmask 39936
  %v26 = vsel %vm24, %v14, 0
  %v29 = vsel %vm24, %v15, 0
  %vm31 = vcmask 1044480
  %v33 = vsel %vm31, %v16, 0
  %35 = vmatprep.subr.mxu0 0.0
  %36 = vmatpush1.msra.mxu0 0.0
  %37 = vmatprep.subr.mxu0 0.0
  %38 = vmatpush1.msra.mxu0 0.0
  %39 = vmatprep.subr.mxu0 0.0
  %40 = vmatpush1.msra.mxu0 0.0
  %41 = vmatprep.subr.mxu0 0.0
  %42 = vmatpush1.msra.mxu0 0.0
  %43 = vmatprep.subr.mxu0 0.0
  %44 = vmatpush1.msra.mxu0 0.0
  %45 = vmatprep.subr.mxu0 0.0
  %46 = vmatpush1.msra.mxu0 0.0
  %47 = vmatprep.subr.mxu0 0.0
  %48 = vmatpush1.msra.mxu0 0.0
  %49 = vmatprep.subr.mxu0 0.0
  %50 = vmatpush1.msra.mxu0 0.0
  %51 = vmatprep.subr.mxu0 0.0
  %52 = vmatpush1.msra.mxu0 0.0
  %53 = vmatprep.subr.mxu0 0.0
  %54 = vmatpush1.msra.mxu0 0.0
  %55 = vmatprep.subr.mxu0 0.0
  %56 = vmatpush1.msra.mxu0 0.0
  %57 = vmatprep.subr.mxu0 0.0
  %58 = vmatpush1.msra.mxu0 0.0
  %59 = vmatprep.subr.mxu0 0.0
  %60 = vmatpush1.msra.mxu0 0.0
  %61 = vmatprep.subr.mxu0 0.0
  %62 = vmatpush1.msra.mxu0 0.0
  %63 = vmatprep.subr.mxu0 0.0
  %64 = vmatpush1.msra.mxu0 0.0
  %65 = vmatprep.subr.mxu0 0.0
  %66 = vmatpush1.msra.mxu0 %v33
  %67 = vmatprep.subr.mxu0 0.0
  %68 = vmatpush2.msra.mxu0 0.0
  %69 = vmatprep.subr.mxu0 0.0
  %70 = vmatpush2.msra.mxu0 0.0
  %71 = vmatprep.subr.mxu0 0.0
  %72 = vmatpush2.msra.mxu0 0.0
  %73 = vmatprep.subr.mxu0 0.0
  %74 = vmatpush2.msra.mxu0 0.0
  %75 = vmatprep.subr.mxu0 0.0
  %76 = vmatpush2.msra.mxu0 0.0
  %77 = vmatprep.subr.mxu0 0.0
  %78 = vmatpush2.msra.mxu0 0.0
  %79 = vmatprep.subr.mxu0 0.0
  %80 = vmatpush2.msra.mxu0 0.0
  %81 = vmatprep.subr.mxu0 0.0
  %82 = vmatpush2.msra.mxu0 0.0
  %83 = vmatprep.subr.mxu0 0.0
  %84 = vmatpush2.msra.mxu0 0.0
  %85 = vmatprep.subr.mxu0 0.0
  %86 = vmatpush2.msra.mxu0 0.0
  %87 = vmatprep.subr.mxu0 0.0
  %88 = vmatpush2.msra.mxu0 0.0
  %89 = vmatprep.subr.mxu0 0.0
  %90 = vmatpush2.msra.mxu0 0.0
  %91 = vmatprep.subr.mxu0 0.0
  %92 = vmatpush2.msra.mxu0 0.0
  %93 = vmatprep.subr.mxu0 0.0
  %94 = vmatpush2.msra.mxu0 0.0
  %95 = vmatprep.subr.mxu0 0.0
  %96 = vmatpush2.msra.mxu0 0.0
  %97 = vmatprep.subr.mxu0 0.0
  %98 = vmatpush2.msra.mxu0 0.0
  %99 = vmatprep.mubr.f32.mxu0 0.0
  %100 = vmatmul.mubr.f32.gmra.mxu0 %v26
  %v101 = vpop.f32.mrf.mxu0
  %v102 = vadd.f32 %v22, %v101
  %v103 = vpop.f32.mrf.mxu0
  %104 = vmatprep.mubr.f32.mxu0 0.0
  %105 = vmatmul.mubr.f32.gmra.mxu0 %v29
  %v106 = vpop.f32.mrf.mxu0
  %v107 = vadd.f32 %v22, %v106
  %v108 = vpop.f32.mrf.mxu0
  %109 = vdwg.mxu0
  %vm110 = vcmask 261120
  %111 = vst.msk [vmem:[%s3] sm:$0xff] %vm110, %v102
  %112 = vst.msk [vmem:[%s3 + $0x8] sm:$0xff] %vm110, %v107
  // Predicated region
  $region14: #{net_attention_forward.4} parent=0 // pred_check
    _
  $region15: #{net_attention_forward.4} parent=0 // pred_check_branch
    %114 = sbr.rel (0) target = $region17
  $region16: #{net_attention_forward.4} parent=0 // pred_region
    _
  $region17: #{net_attention_forward.4} parent=0 // pred_fallthru
    _
  // Predicated region
  $region18: #{net_attention_forward.4} parent=0 // pred_check
    _
  $region19: #{net_attention_forward.4} parent=0 // pred_check_branch
    %116 = sbr.rel (0) target = $region21
  $region20: #{net_attention_forward.4} parent=0 // pred_region
    _
  $region21: #{net_attention_forward.4} parent=0 // pred_fallthru
    _

// kernel: net_attention_forward.7
$region0: #{net_attention_forward.7}
  #allocation0 [shape = 'u32[]', space=smem, size = 0x4, offset = 0x4, fixed_abs, tag = 'smem constant byte address 0x4 - core index']
  #allocation1 [shape = 'u32[144,128]{1,0:T(1,128)}', space=vmem, size = 0x12000, scoped, tag = 'internal scratch']
  #allocation2 [shape = 'f32[1,1]{1,0:T(1,128)S(1)}', space=vmem, size = 0x200, scoped, tag = 'scoped memory for net_attention_forward.7']
  %s0 = inlined_call_operand.vmem [shape: f32[16,32], index: 0, kind: input, shape index: {}]
  %s1 = inlined_call_operand.vmem [shape: f32[1,32], index: 1, kind: input, shape index: {}]
  %s2 = inlined_call_operand.vmem [shape: f32[1,32], index: 2, kind: input, shape index: {}]
  %s3 = inlined_call_operand.vmem [shape: f32[32,32], index: 3, kind: input, shape index: {}]
  %s4 = inlined_call_operand.vmem [shape: f32[1,32], index: 4, kind: input, shape index: {}]
  %s5 = inlined_call_operand.vmem [shape: f32[1,32], index: 5, kind: input, shape index: {}]
  %s6 = inlined_call_operand.<no memory space> [shape: f32[1,1], index: 6, kind: input, shape index: {}]
  %s7 = inlined_call_operand.vmem [shape: f32[1,16], index: 7, kind: output, shape index: {}]
  %s8 = sld [smem:[#allocation0]]
  $region38: #{net_attention_forward.7} parent=0
    _
  %s10 = ssub.s32 1, %s8
  %s11 = scalar_select 0, %s10, %s8
  %v12 = vstv %s6
  %13 = vst [vmem:[#allocation2] sm:$0x1] %v12
  // Predicated region
  $region2: #{net_attention_forward.7} parent=0 // pred_check
    _
  $region3: #{net_attention_forward.7} parent=0 // pred_check_branch
    %15 = sbr.rel (0) target = $region5
  $region4: #{net_attention_forward.7} parent=0 // pred_region
    _
  $region5: #{net_attention_forward.7} parent=0 // pred_fallthru
    _
  // Predicated region
  $region6: #{net_attention_forward.7} parent=0 // pred_check
    _
  $region7: #{net_attention_forward.7} parent=0 // pred_check_branch
    %17 = sbr.rel (0) target = $region9
  $region8: #{net_attention_forward.7} parent=0 // pred_region
    _
  $region9: #{net_attention_forward.7} parent=0 // pred_fallthru
    _
  // Predicated region
  $region10: #{net_attention_forward.7} parent=0 // pred_check
    _
  $region11: #{net_attention_forward.7} parent=0 // pred_check_branch
    %19 = sbr.rel (0) target = $region13
  $region12: #{net_attention_forward.7} parent=0 // pred_region
    _
  $region13: #{net_attention_forward.7} parent=0 // pred_fallthru
    _
  // Predicated region
  $region14: #{net_attention_forward.7} parent=0 // pred_check
    _
  $region15: #{net_attention_forward.7} parent=0 // pred_check_branch
    %21 = sbr.rel (0) target = $region17
  $region16: #{net_attention_forward.7} parent=0 // pred_region
    _
  $region17: #{net_attention_forward.7} parent=0 // pred_fallthru
    _
  // Predicated region
  $region18: #{net_attention_forward.7} parent=0 // pred_check
    _
  $region19: #{net_attention_forward.7} parent=0 // pred_check_branch
    %23 = sbr.rel (0) target = $region21
  $region20: #{net_attention_forward.7} parent=0 // pred_region
    _
  $region21: #{net_attention_forward.7} parent=0 // pred_fallthru
    _
  // Predicated region
  $region22: #{net_attention_forward.7} parent=0 // pred_check
    _
  $region23: #{net_attention_forward.7} parent=0 // pred_check_branch
    %25 = sbr.rel (0) target = $region25
  $region24: #{net_attention_forward.7} parent=0 // pred_region
    _
  $region25: #{net_attention_forward.7} parent=0 // pred_fallthru
    _
  // Predicated region
  $region26: #{net_attention_forward.7} parent=0 // pred_check
    _
  $region27: #{net_attention_forward.7} parent=0 // pred_check_branch
    %27 = sbr.rel (0) target = $region29
  $region28: #{net_attention_forward.7} parent=0 // pred_region
    _
  $region29: #{net_attention_forward.7} parent=0 // pred_fallthru
    _
  %v28 = vld [vmem:[%s0] sm:$0xff]
  %v29 = vld [vmem:[%s0 + $0x8] sm:$0xff]
  %v30 = vld [vmem:[%s1] sm:$0x1]
  %v31 = vld [vmem:[%s2] sm:$0x1]
  %vm32 = vcmask 261120
  %v33 = vsel %vm32, %v28, 0.0
  %34 = vadd.xlane.f32.xlu0 %v33
  %v35 = vpop.xlane.xlu0 %34
  %v36 = vsel %vm32, %v29, 0.0
  %37 = vadd.xlane.f32.xlu0 %v36
  %v38 = vpop.xlane.xlu0 %37
  %v39 = vrcp.pop 32.0
  %v40 = vmul.f32 %v35, %v39
  %v41 = vmul.f32 %v38, %v39
  %v42 = vsub.f32 %v28, %v40
  %v43 = vsub.f32 %v29, %v41
  %v44 = vmul.f32 %v42, %v42
  %v45 = vmul.f32 %v43, %v43
  %v46 = vsel %vm32, %v44, 0.0
  %47 = vadd.xlane.f32.xlu0 %v46
  %v48 = vpop.xlane.xlu0 %47
  %v49 = vsel %vm32, %v45, 0.0
  %50 = vadd.xlane.f32.xlu0 %v49
  %v51 = vpop.xlane.xlu0 %50
  %v52 = vmul.f32 %v48, %v39
  %v53 = vmul.f32 %v51, %v39
  %v54 = vadd.f32 %v52, 1e-05
  %v55 = vadd.f32 %v53, 1e-05
  %v56 = vrsqrt.pop %v54
  %v57 = vrsqrt.pop %v55
  %v58 = vmul.f32 %v42, %v56
  %v59 = vmul.f32 %v43, %v57
  %v61 = vlaneseq
  %v62 = vshrl.u32 %v61, 7
  %v63 = vsub.s32 0, %v62
  %v64 = vrot.slane %v30, %v63
  %v66 = vmul.f32 %v58, %v64
  %v67 = vmul.f32 %v59, %v64
  %v69 = vlaneseq
  %v70 = vshrl.u32 %v69, 7
  %v71 = vsub.s32 0, %v70
  %v72 = vrot.slane %v31, %v71
  %v74 = vadd.f32 %v66, %v72
  %v75 = vadd.f32 %v67, %v72
  %v76 = vld [vmem:[%s3] sm:$0xff]
  %v77 = vld [vmem:[%s3 + $0x8] sm:$0xff]
  %v78 = vld [vmem:[%s3 + $0x10] sm:$0xff]
  %v79 = vld [vmem:[%s3 + $0x18] sm:$0xff]
  %v80 = vld [vmem:[%s4] sm:$0x1]
  %v82 = vlaneseq
  %v83 = vshrl.u32 %v82, 7
  %v84 = vsub.s32 0, %v83
  %v85 = vrot.slane %v80, %v84
  %v88 = vsel %vm32, %v74, 0
  %v91 = vsel %vm32, %v75, 0
  %93 = vmatprep.subr.mxu0 0.0
  %94 = vmatpush1.msra.mxu0 0.0
  %95 = vmatprep.subr.mxu0 0.0
  %96 = vmatpush1.msra.mxu0 0.0
  %97 = vmatprep.subr.mxu0 0.0
  %98 = vmatpush1.msra.mxu0 0.0
  %99 = vmatprep.subr.mxu0 0.0
  %100 = vmatpush1.msra.mxu0 0.0
  %101 = vmatprep.subr.mxu0 0.0
  %102 = vmatpush1.msra.mxu0 0.0
  %103 = vmatprep.subr.mxu0 0.0
  %104 = vmatpush1.msra.mxu0 0.0
  %105 = vmatprep.subr.mxu0 0.0
  %106 = vmatpush1.msra.mxu0 0.0
  %107 = vmatprep.subr.mxu0 0.0
  %108 = vmatpush1.msra.mxu0 0.0
  %109 = vmatprep.subr.mxu0 0.0
  %110 = vmatpush1.msra.mxu0 0.0
  %111 = vmatprep.subr.mxu0 0.0
  %112 = vmatpush1.msra.mxu0 0.0
  %113 = vmatprep.subr.mxu0 0.0
  %114 = vmatpush1.msra.mxu0 0.0
  %115 = vmatprep.subr.mxu0 0.0
  %116 = vmatpush1.msra.mxu0 0.0
  %117 = vmatprep.subr.mxu0 0.0
  %118 = vmatpush1.msra.mxu0 %v79
  %119 = vmatprep.subr.mxu0 0.0
  %120 = vmatpush1.msra.mxu0 %v78
  %121 = vmatprep.subr.mxu0 0.0
  %122 = vmatpush1.msra.mxu0 %v77
  %123 = vmatprep.subr.mxu0 0.0
  %124 = vmatpush1.msra.mxu0 %v76
  %125 = vmatprep.subr.mxu0 0.0
  %126 = vmatpush2.msra.mxu0 0.0
  %127 = vmatprep.subr.mxu0 0.0
  %128 = vmatpush2.msra.mxu0 0.0
  %129 = vmatprep.subr.mxu0 0.0
  %130 = vmatpush2.msra.mxu0 0.0
  %131 = vmatprep.subr.mxu0 0.0
  %132 = vmatpush2.msra.mxu0 0.0
  %133 = vmatprep.subr.mxu0 0.0
  %134 = vmatpush2.msra.mxu0 0.0
  %135 = vmatprep.subr.mxu0 0.0
  %136 = vmatpush2.msra.mxu0 0.0
  %137 = vmatprep.subr.mxu0 0.0
  %138 = vmatpush2.msra.mxu0 0.0
  %139 = vmatprep.subr.mxu0 0.0
  %140 = vmatpush2.msra.mxu0 0.0
  %141 = vmatprep.subr.mxu0 0.0
  %142 = vmatpush2.msra.mxu0 0.0
  %143 = vmatprep.subr.mxu0 0.0
  %144 = vmatpush2.msra.mxu0 0.0
  %145 = vmatprep.subr.mxu0 0.0
  %146 = vmatpush2.msra.mxu0 0.0
  %147 = vmatprep.subr.mxu0 0.0
  %148 = vmatpush2.msra.mxu0 0.0
  %149 = vmatprep.subr.mxu0 0.0
  %150 = vmatpush2.msra.mxu0 0.0
  %151 = vmatprep.subr.mxu0 0.0
  %152 = vmatpush2.msra.mxu0 0.0
  %153 = vmatprep.subr.mxu0 0.0
  %154 = vmatpush2.msra.mxu0 0.0
  %155 = vmatprep.subr.mxu0 0.0
  %156 = vmatpush2.msra.mxu0 0.0
  %157 = vmatprep.mubr.f32.mxu0 0.0
  %158 = vmatmul.mubr.f32.gmra.mxu0 %v88
  %v159 = vpop.f32.mrf.mxu0
  %v160 = vadd.f32 %v85, %v159
  %v161 = vpop.f32.mrf.mxu0
  %162 = vmatprep.mubr.f32.mxu0 0.0
  %163 = vmatmul.mubr.f32.gmra.mxu0 %v91
  %v164 = vpop.f32.mrf.mxu0
  %v165 = vadd.f32 %v85, %v164
  %v166 = vpop.f32.mrf.mxu0
  %167 = vdwg.mxu0
  %v168 = vmax.f32 %v160, 0.0
  %v169 = vmax.f32 %v165, 0.0
  %v170 = vld [vmem:[%s5] sm:$0x1]
  %v171 = vld [vmem:[#allocation2] sm:$0x1]
  %173 = vset.pattern.permute.xlu0 0
  %174 = vperm.xlu0 %173, %v171
  %v175 = vpop.permute.xlu0 %174
  %v177 = vlaneseq
  %v178 = vshrl.u32 %v177, 7
  %v179 = vsub.s32 0, %v178
  %v180 = vrot.slane %v175, %v179
  %v182 = vsel %vm32, %v170, 0
  %v185 = vsel %vm32, %v168, 0
  %v188 = vsel %vm32, %v169, 0
  %190 = vmatprep.subr.mxu0 0.0
  %191 = vmatpush1.xpose.msra.mxu0 0.0
  %192 = vmatprep.subr.mxu0 0.0
  %193 = vmatpush1.xpose.msra.mxu0 0.0
  %194 = vmatprep.subr.mxu0 0.0
  %195 = vmatpush1.xpose.msra.mxu0 0.0
  %196 = vmatprep.subr.mxu0 0.0
  %197 = vmatpush1.xpose.msra.mxu0 0.0
  %198 = vmatprep.subr.mxu0 0.0
  %199 = vmatpush1.xpose.msra.mxu0 0.0
  %200 = vmatprep.subr.mxu0 0.0
  %201 = vmatpush1.xpose.msra.mxu0 0.0
  %202 = vmatprep.subr.mxu0 0.0
  %203 = vmatpush1.xpose.msra.mxu0 0.0
  %204 = vmatprep.subr.mxu0 0.0
  %205 = vmatpush1.xpose.msra.mxu0 0.0
  %206 = vmatprep.subr.mxu0 0.0
  %207 = vmatpush1.xpose.msra.mxu0 0.0
  %208 = vmatprep.subr.mxu0 0.0
  %209 = vmatpush1.xpose.msra.mxu0 0.0
  %210 = vmatprep.subr.mxu0 0.0
  %211 = vmatpush1.xpose.msra.mxu0 0.0
  %212 = vmatprep.subr.mxu0 0.0
  %213 = vmatpush1.xpose.msra.mxu0 0.0
  %214 = vmatprep.subr.mxu0 0.0
  %215 = vmatpush1.xpose.msra.mxu0 0.0
  %216 = vmatprep.subr.mxu0 0.0
  %217 = vmatpush1.xpose.msra.mxu0 0.0
  %218 = vmatprep.subr.mxu0 0.0
  %219 = vmatpush1.xpose.msra.mxu0 %v188
  %220 = vmatprep.subr.mxu0 0.0
  %221 = vmatpush1.xpose.msra.mxu0 %v185
  %222 = vmatprep.subr.mxu0 0.0
  %223 = vmatpush2.xpose.msra.mxu0 0.0
  %224 = vmatprep.subr.mxu0 0.0
  %225 = vmatpush2.xpose.msra.mxu0 0.0
  %226 = vmatprep.subr.mxu0 0.0
  %227 = vmatpush2.xpose.msra.mxu0 0.0
  %228 = vmatprep.subr.mxu0 0.0
  %229 = vmatpush2.xpose.msra.mxu0 0.0
  %230 = vmatprep.subr.mxu0 0.0
  %231 = vmatpush2.xpose.msra.mxu0 0.0
  %232 = vmatprep.subr.mxu0 0.0
  %233 = vmatpush2.xpose.msra.mxu0 0.0
  %234 = vmatprep.subr.mxu0 0.0
  %235 = vmatpush2.xpose.msra.mxu0 0.0
  %236 = vmatprep.subr.mxu0 0.0
  %237 = vmatpush2.xpose.msra.mxu0 0.0
  %238 = vmatprep.subr.mxu0 0.0
  %239 = vmatpush2.xpose.msra.mxu0 0.0
  %240 = vmatprep.subr.mxu0 0.0
  %241 = vmatpush2.xpose.msra.mxu0 0.0
  %242 = vmatprep.subr.mxu0 0.0
  %243 = vmatpush2.xpose.msra.mxu0 0.0
  %244 = vmatprep.subr.mxu0 0.0
  %245 = vmatpush2.xpose.msra.mxu0 0.0
  %246 = vmatprep.subr.mxu0 0.0
  %247 = vmatpush2.xpose.msra.mxu0 0.0
  %248 = vmatprep.subr.mxu0 0.0
  %249 = vmatpush2.xpose.msra.mxu0 0.0
  %250 = vmatprep.subr.mxu0 0.0
  %251 = vmatpush2.xpose.msra.mxu0 0.0
  %252 = vmatprep.subr.mxu0 0.0
  %253 = vmatpush2.xpose.msra.mxu0 0.0
  %254 = vmatprep.mubr.f32.mxu0 0.0
  %255 = vmatmul.mubr.f32.gmra.mxu0 %v182
  %v256 = vpop.f32.mrf.mxu0
  %v257 = vadd.f32 %v180, %v256
  %v258 = vpop.f32.mrf.mxu0
  %259 = vdwg.mxu0
  %vm260 = vcmask 122880
  %261 = vst.msk [vmem:[%s7] sm:$0x1] %vm260, %v257
  // Predicated region
  $region30: #{net_attention_forward.7} parent=0 // pred_check
    _
  $region31: #{net_attention_forward.7} parent=0 // pred_check_branch
    %263 = sbr.rel (0) target = $region33
  $region32: #{net_attention_forward.7} parent=0 // pred_region
    _
  $region33: #{net_attention_forward.7} parent=0 // pred_fallthru
    _
  // Predicated region
  $region34: #{net_attention_forward.7} parent=0 // pred_check
    _
  $region35: #{net_attention_forward.7} parent=0 // pred_check_branch
    %265 = sbr.rel (0) target = $region37
  $region36: #{net_attention_forward.7} parent=0 // pred_region
    _
  $region37: #{net_attention_forward.7} parent=0 // pred_fallthru
    _

// kernel: net_attention_forward.5
$region0: #{net_attention_forward.5}
  #allocation0 [shape = 'u32[]', space=smem, size = 0x4, offset = 0x4, fixed_abs, tag = 'smem constant byte address 0x4 - core index']
  #allocation1 [shape = 'u32[144,128]{1,0:T(1,128)}', space=vmem, size = 0x12000, scoped, tag = 'internal scratch']
  %s0 = inlined_call_operand.vmem [shape: f32[2,8,32], index: 0, kind: input, shape index: {}]
  %s1 = inlined_call_operand.vmem [shape: f32[32,96], index: 1, kind: input, shape index: {}]
  %s2 = inlined_call_operand.vmem [shape: f32[1,96], index: 2, kind: input, shape index: {}]
  %s3 = inlined_call_operand.vmem [shape: f32[32,32], index: 3, kind: input, shape index: {}]
  %s4 = inlined_call_operand.vmem [shape: f32[1,32], index: 4, kind: input, shape index: {}]
  %s5 = inlined_call_operand.vmem [shape: f32[1,32], index: 5, kind: input, shape index: {}]
  %s6 = inlined_call_operand.vmem [shape: f32[1,32], index: 6, kind: input, shape index: {}]
  %s7 = inlined_call_operand.vmem [shape: f32[32,128], index: 7, kind: input, shape index: {}]
  %s8 = inlined_call_operand.vmem [shape: f32[1,128], index: 8, kind: input, shape index: {}]
  %s9 = inlined_call_operand.vmem [shape: f32[128,32], index: 9, kind: input, shape index: {}]
  %s10 = inlined_call_operand.vmem [shape: f32[1,32], index: 10, kind: input, shape index: {}]
  %s11 = inlined_call_operand.vmem [shape: f32[1,32], index: 11, kind: input, shape index: {}]
  %s12 = inlined_call_operand.vmem [shape: f32[1,32], index: 12, kind: input, shape index: {}]
  %s13 = inlined_call_operand.vmem [shape: f32[2,8,32], index: 13, kind: output, shape index: {}]
  %s14 = sld [smem:[#allocation0]]
  $region85: #{net_attention_forward.5} parent=0
    _
  %s16 = ssub.s32 1, %s14
  %s17 = scalar_select 0, %s16, %s14
  loop: start=0, step=1, limit=4
  $region2: #{net_attention_forward.5} parent=0 // loop_pre_header
    _
  $region3: #{net_attention_forward.5} parent=0 // loop_header
    %s19 = sphi 0, %s23
    %p20 = scmp.ge.s32.totalorder %s19, 4
    %s29 = sphi 0, %s31
    %s32 = sphi 0, %s29
    %s33 = sphi 0, %s32
    %s49 = sphi 0, %s33
    %s53 = sphi 0, %s53
    %s55 = sphi 0, %s53
    %s56 = sphi 0, %s55
    %s70 = sphi 0, %s56
    %s74 = sphi 0, %s74
    %s76 = sphi 0, %s74
    %s77 = sphi 0, %s76
    %s91 = sphi 0, %s77
    %s95 = sphi 0, %s95
    %s97 = sphi 0, %s95
    %s98 = sphi 0, %s97
    %s112 = sphi 0, %s98
    %s116 = sphi 0, %s116
    %s118 = sphi 0, %s116
    %s119 = sphi 0, %s118
    %s133 = sphi 0, %s119
    %s137 = sphi 0, %s137
    %s139 = sphi 0, %s137
    %s140 = sphi 0, %s139
    %s154 = sphi 0, %s140
    %s158 = sphi 0, %s158
    %s160 = sphi 0, %s158
    %s161 = sphi 0, %s160
    %s175 = sphi 0, %s161
    %s179 = sphi 0, %s179
    %s181 = sphi 0, %s179
    %s182 = sphi 0, %s181
    %s196 = sphi 0, %s182
    %s200 = sphi 0, %s200
    %s202 = sphi 0, %s200
    %s203 = sphi 0, %s202
    %s217 = sphi 0, %s203
    %s221 = sphi 0, %s221
    %s223 = sphi 0, %s221
    %s224 = sphi 0, %s223
    %s238 = sphi 0, %s224
    %s242 = sphi 0, %s242
    %s244 = sphi 0, %s242
    %s245 = sphi 0, %s244
    %s259 = sphi 0, %s245
    %s263 = sphi 0, %s263
    %s265 = sphi 0, %s263
    %s266 = sphi 0, %s265
    %s280 = sphi 0, %s266
    %s284 = sphi 0, %s284
    %s286 = sphi 0, %s284
    %s287 = sphi 0, %s286
    %s301 = sphi 0, %s287
    %s307 = sphi 0, %s309
    %s310 = sphi 0, %s307
    %s311 = sphi 0, %s310
    %s327 = sphi 0, %s311
  $region4: #{net_attention_forward.5} parent=0 // loop_header_branch
    %22 = sbr.rel (%p20) target = $region8
  $region5: #{net_attention_forward.5} parent=0 // loop_body
    %s24 = ssub.s32 %s19, 1
    %s25 = ssub.s32 %s19, 2
    %s26 = sadd.s32 %s19, 1
    %s27 = ssub.s32 %s19, %s26
    %p28 = scmp.eq.s32.totalorder %s27, 0
    %s30 = sadd.s32 %s29, 1
    %s31 = scalar_select %p28, %s29, %s30
    %p34 = pneg %p28
    %p35 = scmp.eq.s32.totalorder %s19, 1
    %p36 = por %p34, %p35
    %p37 = scmp.ne.s32.totalorder %s29, %s32
    %p38 = scmp.eq.s32.totalorder %s19, 0
    %p39 = por %p37, %p38
    %p40 = scmp.ne.s32.totalorder %s29, %s32
    %p41 = scmp.eq.s32.totalorder %s24, 1
    %p42 = por %p40, %p41
    %p43 = scmp.ne.s32.totalorder %s32, %s33
    %p44 = scmp.eq.s32.totalorder %s24, 0
    %p45 = por %p43, %p44
    %p46 = scmp.ne.s32.totalorder %s32, %s33
    %p47 = scmp.eq.s32.totalorder %s25, 1
    %p48 = por %p46, %p47
    %p50 = scmp.ne.s32.totalorder %s33, %s49
    %p51 = scmp.eq.s32.totalorder %s25, 0
    %p52 = por %p50, %p51
    %s54 = sadd.s32 %s53, 1
    %p57 = scmp.eq.s32.totalorder %s19, 1
    %p58 = scmp.ne.s32.totalorder %s53, %s55
    %p59 = scmp.eq.s32.totalorder %s19, 0
    %p60 = por %p58, %p59
    %p61 = scmp.ne.s32.totalorder %s53, %s55
    %p62 = scmp.eq.s32.totalorder %s24, 1
    %p63 = por %p61, %p62
    %p64 = scmp.ne.s32.totalorder %s55, %s56
    %p65 = scmp.eq.s32.totalorder %s24, 0
    %p66 = por %p64, %p65
    %p67 = scmp.ne.s32.totalorder %s55, %s56
    %p68 = scmp.eq.s32.totalorder %s25, 1
    %p69 = por %p67, %p68
    %p71 = scmp.ne.s32.totalorder %s56, %s70
    %p72 = scmp.eq.s32.totalorder %s25, 0
    %p73 = por %p71, %p72
    %s75 = sadd.s32 %s74, 1
    %p78 = scmp.eq.s32.totalorder %s19, 1
    %p79 = scmp.ne.s32.totalorder %s74, %s76
    %p80 = scmp.eq.s32.totalorder %s19, 0
    %p81 = por %p79, %p80
    %p82 = scmp.ne.s32.totalorder %s74, %s76
    %p83 = scmp.eq.s32.totalorder %s24, 1
    %p84 = por %p82, %p83
    %p85 = scmp.ne.s32.totalorder %s76, %s77
    %p86 = scmp.eq.s32.totalorder %s24, 0
    %p87 = por %p85, %p86
    %p88 = scmp.ne.s32.totalorder %s76, %s77
    %p89 = scmp.eq.s32.totalorder %s25, 1
    %p90 = por %p88, %p89
    %p92 = scmp.ne.s32.totalorder %s77, %s91
    %p93 = scmp.eq.s32.totalorder %s25, 0
    %p94 = por %p92, %p93
    %s96 = sadd.s32 %s95, 1
    %p99 = scmp.eq.s32.totalorder %s19, 1
    %p100 = scmp.ne.s32.totalorder %s95, %s97
    %p101 = scmp.eq.s32.totalorder %s19, 0
    %p102 = por %p100, %p101
    %p103 = scmp.ne.s32.totalorder %s95, %s97
    %p104 = scmp.eq.s32.totalorder %s24, 1
    %p105 = por %p103, %p104
    %p106 = scmp.ne.s32.totalorder %s97, %s98
    %p107 = scmp.eq.s32.totalorder %s24, 0
    %p108 = por %p106, %p107
    %p109 = scmp.ne.s32.totalorder %s97, %s98
    %p110 = scmp.eq.s32.totalorder %s25, 1
    %p111 = por %p109, %p110
    %p113 = scmp.ne.s32.totalorder %s98, %s112
    %p114 = scmp.eq.s32.totalorder %s25, 0
    %p115 = por %p113, %p114
    %s117 = sadd.s32 %s116, 1
    %p120 = scmp.eq.s32.totalorder %s19, 1
    %p121 = scmp.ne.s32.totalorder %s116, %s118
    %p122 = scmp.eq.s32.totalorder %s19, 0
    %p123 = por %p121, %p122
    %p124 = scmp.ne.s32.totalorder %s116, %s118
    %p125 = scmp.eq.s32.totalorder %s24, 1
    %p126 = por %p124, %p125
    %p127 = scmp.ne.s32.totalorder %s118, %s119
    %p128 = scmp.eq.s32.totalorder %s24, 0
    %p129 = por %p127, %p128
    %p130 = scmp.ne.s32.totalorder %s118, %s119
    %p131 = scmp.eq.s32.totalorder %s25, 1
    %p132 = por %p130, %p131
    %p134 = scmp.ne.s32.totalorder %s119, %s133
    %p135 = scmp.eq.s32.totalorder %s25, 0
    %p136 = por %p134, %p135
    %s138 = sadd.s32 %s137, 1
    %p141 = scmp.eq.s32.totalorder %s19, 1
    %p142 = scmp.ne.s32.totalorder %s137, %s139
    %p143 = scmp.eq.s32.totalorder %s19, 0
    %p144 = por %p142, %p143
    %p145 = scmp.ne.s32.totalorder %s137, %s139
    %p146 = scmp.eq.s32.totalorder %s24, 1
    %p147 = por %p145, %p146
    %p148 = scmp.ne.s32.totalorder %s139, %s140
    %p149 = scmp.eq.s32.totalorder %s24, 0
    %p150 = por %p148, %p149
    %p151 = scmp.ne.s32.totalorder %s139, %s140
    %p152 = scmp.eq.s32.totalorder %s25, 1
    %p153 = por %p151, %p152
    %p155 = scmp.ne.s32.totalorder %s140, %s154
    %p156 = scmp.eq.s32.totalorder %s25, 0
    %p157 = por %p155, %p156
    %s159 = sadd.s32 %s158, 1
    %p162 = scmp.eq.s32.totalorder %s19, 1
    %p163 = scmp.ne.s32.totalorder %s158, %s160
    %p164 = scmp.eq.s32.totalorder %s19, 0
    %p165 = por %p163, %p164
    %p166 = scmp.ne.s32.totalorder %s158, %s160
    %p167 = scmp.eq.s32.totalorder %s24, 1
    %p168 = por %p166, %p167
    %p169 = scmp.ne.s32.totalorder %s160, %s161
    %p170 = scmp.eq.s32.totalorder %s24, 0
    %p171 = por %p169, %p170
    %p172 = scmp.ne.s32.totalorder %s160, %s161
    %p173 = scmp.eq.s32.totalorder %s25, 1
    %p174 = por %p172, %p173
    %p176 = scmp.ne.s32.totalorder %s161, %s175
    %p177 = scmp.eq.s32.totalorder %s25, 0
    %p178 = por %p176, %p177
    %s180 = sadd.s32 %s179, 1
    %p183 = scmp.eq.s32.totalorder %s19, 1
    %p184 = scmp.ne.s32.totalorder %s179, %s181
    %p185 = scmp.eq.s32.totalorder %s19, 0
    %p186 = por %p184, %p185
    %p187 = scmp.ne.s32.totalorder %s179, %s181
    %p188 = scmp.eq.s32.totalorder %s24, 1
    %p189 = por %p187, %p188
    %p190 = scmp.ne.s32.totalorder %s181, %s182
    %p191 = scmp.eq.s32.totalorder %s24, 0
    %p192 = por %p190, %p191
    %p193 = scmp.ne.s32.totalorder %s181, %s182
    %p194 = scmp.eq.s32.totalorder %s25, 1
    %p195 = por %p193, %p194
    %p197 = scmp.ne.s32.totalorder %s182, %s196
    %p198 = scmp.eq.s32.totalorder %s25, 0
    %p199 = por %p197, %p198
    %s201 = sadd.s32 %s200, 1
    %p204 = scmp.eq.s32.totalorder %s19, 1
    %p205 = scmp.ne.s32.totalorder %s200, %s202
    %p206 = scmp.eq.s32.totalorder %s19, 0
    %p207 = por %p205, %p206
    %p208 = scmp.ne.s32.totalorder %s200, %s202
    %p209 = scmp.eq.s32.totalorder %s24, 1
    %p210 = por %p208, %p209
    %p211 = scmp.ne.s32.totalorder %s202, %s203
    %p212 = scmp.eq.s32.totalorder %s24, 0
    %p213 = por %p211, %p212
    %p214 = scmp.ne.s32.totalorder %s202, %s203
    %p215 = scmp.eq.s32.totalorder %s25, 1
    %p216 = por %p214, %p215
    %p218 = scmp.ne.s32.totalorder %s203, %s217
    %p219 = scmp.eq.s32.totalorder %s25, 0
    %p220 = por %p218, %p219
    %s222 = sadd.s32 %s221, 1
    %p225 = scmp.eq.s32.totalorder %s19, 1
    %p226 = scmp.ne.s32.totalorder %s221, %s223
    %p227 = scmp.eq.s32.totalorder %s19, 0
    %p228 = por %p226, %p227
    %p229 = scmp.ne.s32.totalorder %s221, %s223
    %p230 = scmp.eq.s32.totalorder %s24, 1
    %p231 = por %p229, %p230
    %p232 = scmp.ne.s32.totalorder %s223, %s224
    %p233 = scmp.eq.s32.totalorder %s24, 0
    %p234 = por %p232, %p233
    %p235 = scmp.ne.s32.totalorder %s223, %s224
    %p236 = scmp.eq.s32.totalorder %s25, 1
    %p237 = por %p235, %p236
    %p239 = scmp.ne.s32.totalorder %s224, %s238
    %p240 = scmp.eq.s32.totalorder %s25, 0
    %p241 = por %p239, %p240
    %s243 = sadd.s32 %s242, 1
    %p246 = scmp.eq.s32.totalorder %s19, 1
    %p247 = scmp.ne.s32.totalorder %s242, %s244
    %p248 = scmp.eq.s32.totalorder %s19, 0
    %p249 = por %p247, %p248
    %p250 = scmp.ne.s32.totalorder %s242, %s244
    %p251 = scmp.eq.s32.totalorder %s24, 1
    %p252 = por %p250, %p251
    %p253 = scmp.ne.s32.totalorder %s244, %s245
    %p254 = scmp.eq.s32.totalorder %s24, 0
    %p255 = por %p253, %p254
    %p256 = scmp.ne.s32.totalorder %s244, %s245
    %p257 = scmp.eq.s32.totalorder %s25, 1
    %p258 = por %p256, %p257
    %p260 = scmp.ne.s32.totalorder %s245, %s259
    %p261 = scmp.eq.s32.totalorder %s25, 0
    %p262 = por %p260, %p261
    %s264 = sadd.s32 %s263, 1
    %p267 = scmp.eq.s32.totalorder %s19, 1
    %p268 = scmp.ne.s32.totalorder %s263, %s265
    %p269 = scmp.eq.s32.totalorder %s19, 0
    %p270 = por %p268, %p269
    %p271 = scmp.ne.s32.totalorder %s263, %s265
    %p272 = scmp.eq.s32.totalorder %s24, 1
    %p273 = por %p271, %p272
    %p274 = scmp.ne.s32.totalorder %s265, %s266
    %p275 = scmp.eq.s32.totalorder %s24, 0
    %p276 = por %p274, %p275
    %p277 = scmp.ne.s32.totalorder %s265, %s266
    %p278 = scmp.eq.s32.totalorder %s25, 1
    %p279 = por %p277, %p278
    %p281 = scmp.ne.s32.totalorder %s266, %s280
    %p282 = scmp.eq.s32.totalorder %s25, 0
    %p283 = por %p281, %p282
    %s285 = sadd.s32 %s284, 1
    %p288 = scmp.eq.s32.totalorder %s19, 1
    %p289 = scmp.ne.s32.totalorder %s284, %s286
    %p290 = scmp.eq.s32.totalorder %s19, 0
    %p291 = por %p289, %p290
    %p292 = scmp.ne.s32.totalorder %s284, %s286
    %p293 = scmp.eq.s32.totalorder %s24, 1
    %p294 = por %p292, %p293
    %p295 = scmp.ne.s32.totalorder %s286, %s287
    %p296 = scmp.eq.s32.totalorder %s24, 0
    %p297 = por %p295, %p296
    %p298 = scmp.ne.s32.totalorder %s286, %s287
    %p299 = scmp.eq.s32.totalorder %s25, 1
    %p300 = por %p298, %p299
    %p302 = scmp.ne.s32.totalorder %s287, %s301
    %p303 = scmp.eq.s32.totalorder %s25, 0
    %p304 = por %p302, %p303
    %s305 = ssub.s32 %s19, %s26
    %p306 = scmp.eq.s32.totalorder %s305, 0
    %s308 = sadd.s32 %s307, 1
    %s309 = scalar_select %p306, %s307, %s308
    %p312 = pneg %p306
    %p313 = scmp.eq.s32.totalorder %s19, 1
    %p314 = por %p312, %p313
    %p315 = scmp.ne.s32.totalorder %s307, %s310
    %p316 = scmp.eq.s32.totalorder %s19, 0
    %p317 = por %p315, %p316
    %p318 = scmp.ne.s32.totalorder %s307, %s310
    %p319 = scmp.eq.s32.totalorder %s24, 1
    %p320 = por %p318, %p319
    %p321 = scmp.ne.s32.totalorder %s310, %s311
    %p322 = scmp.eq.s32.totalorder %s24, 0
    %p323 = por %p321, %p322
    %p324 = scmp.ne.s32.totalorder %s310, %s311
    %p325 = scmp.eq.s32.totalorder %s25, 1
    %p326 = por %p324, %p325
    %p328 = scmp.ne.s32.totalorder %s311, %s327
    %p329 = scmp.eq.s32.totalorder %s25, 0
    %p330 = por %p328, %p329
    %p331 = scmp.le.s32.totalorder 1, %s19
    %p332 = scmp.lt.s32.totalorder %s19, 3
    %p333 = pnand %p331, %p332
    %p334 = pneg %p333
    // Predicated region
    $region9: #{net_attention_forward.5} parent=5 // pred_check
      _
    $region10: #{net_attention_forward.5} parent=5 // pred_check_branch
      %336 = sbr.rel (%p333) target = $region12
    $region11: #{net_attention_forward.5} parent=5 // pred_region
      %s337 = ssub.s32 %s19, 1
      // Predicated region
      $region13: #{net_attention_forward.5} parent=11 // pred_check
        %p338 = pneg %p66
      $region14: #{net_attention_forward.5} parent=11 // pred_check_branch
        %340 = sbr.rel (%p338) target = $region16
      $region15: #{net_attention_forward.5} parent=11 // pred_region
        _
      $region16: #{net_attention_forward.5} parent=11 // pred_fallthru
        _
      // Predicated region
      $region17: #{net_attention_forward.5} parent=11 // pred_check
        %p341 = pneg %p87
      $region18: #{net_attention_forward.5} parent=11 // pred_check_branch
        %343 = sbr.rel (%p341) target = $region20
      $region19: #{net_attention_forward.5} parent=11 // pred_region
        _
      $region20: #{net_attention_forward.5} parent=11 // pred_fallthru
        _
      // Predicated region
      $region21: #{net_attention_forward.5} parent=11 // pred_check
        %p344 = pneg %p108
      $region22: #{net_attention_forward.5} parent=11 // pred_check_branch
        %346 = sbr.rel (%p344) target = $region24
      $region23: #{net_attention_forward.5} parent=11 // pred_region
        _
      $region24: #{net_attention_forward.5} parent=11 // pred_fallthru
        _
      // Predicated region
      $region25: #{net_attention_forward.5} parent=11 // pred_check
        %p347 = pneg %p129
      $region26: #{net_attention_forward.5} parent=11 // pred_check_branch
        %349 = sbr.rel (%p347) target = $region28
      $region27: #{net_attention_forward.5} parent=11 // pred_region
        _
      $region28: #{net_attention_forward.5} parent=11 // pred_fallthru
        _
      // Predicated region
      $region29: #{net_attention_forward.5} parent=11 // pred_check
        %p350 = pneg %p150
      $region30: #{net_attention_forward.5} parent=11 // pred_check_branch
        %352 = sbr.rel (%p350) target = $region32
      $region31: #{net_attention_forward.5} parent=11 // pred_region
        _
      $region32: #{net_attention_forward.5} parent=11 // pred_fallthru
        _
      // Predicated region
      $region33: #{net_attention_forward.5} parent=11 // pred_check
        %p353 = pneg %p171
      $region34: #{net_attention_forward.5} parent=11 // pred_check_branch
        %355 = sbr.rel (%p353) target = $region36
      $region35: #{net_attention_forward.5} parent=11 // pred_region
        _
      $region36: #{net_attention_forward.5} parent=11 // pred_fallthru
        _
      // Predicated region
      $region37: #{net_attention_forward.5} parent=11 // pred_check
        %p356 = pneg %p192
      $region38: #{net_attention_forward.5} parent=11 // pred_check_branch
        %358 = sbr.rel (%p356) target = $region40
      $region39: #{net_attention_forward.5} parent=11 // pred_region
        _
      $region40: #{net_attention_forward.5} parent=11 // pred_fallthru
        _
      // Predicated region
      $region41: #{net_attention_forward.5} parent=11 // pred_check
        %p359 = pneg %p213
      $region42: #{net_attention_forward.5} parent=11 // pred_check_branch
        %361 = sbr.rel (%p359) target = $region44
      $region43: #{net_attention_forward.5} parent=11 // pred_region
        _
      $region44: #{net_attention_forward.5} parent=11 // pred_fallthru
        _
      // Predicated region
      $region45: #{net_attention_forward.5} parent=11 // pred_check
        %p362 = pneg %p234
      $region46: #{net_attention_forward.5} parent=11 // pred_check_branch
        %364 = sbr.rel (%p362) target = $region48
      $region47: #{net_attention_forward.5} parent=11 // pred_region
        _
      $region48: #{net_attention_forward.5} parent=11 // pred_fallthru
        _
      // Predicated region
      $region49: #{net_attention_forward.5} parent=11 // pred_check
        %p365 = pneg %p255
      $region50: #{net_attention_forward.5} parent=11 // pred_check_branch
        %367 = sbr.rel (%p365) target = $region52
      $region51: #{net_attention_forward.5} parent=11 // pred_region
        _
      $region52: #{net_attention_forward.5} parent=11 // pred_fallthru
        _
      // Predicated region
      $region53: #{net_attention_forward.5} parent=11 // pred_check
        %p368 = pneg %p276
      $region54: #{net_attention_forward.5} parent=11 // pred_check_branch
        %370 = sbr.rel (%p368) target = $region56
      $region55: #{net_attention_forward.5} parent=11 // pred_region
        _
      $region56: #{net_attention_forward.5} parent=11 // pred_fallthru
        _
      // Predicated region
      $region57: #{net_attention_forward.5} parent=11 // pred_check
        %p371 = pneg %p297
      $region58: #{net_attention_forward.5} parent=11 // pred_check_branch
        %373 = sbr.rel (%p371) target = $region60
      $region59: #{net_attention_forward.5} parent=11 // pred_region
        _
      $region60: #{net_attention_forward.5} parent=11 // pred_fallthru
        _
    $region12: #{net_attention_forward.5} parent=5 // pred_fallthru
      _
    %p374 = scmp.lt.s32.totalorder %s19, 2
    // Predicated region
    $region61: #{net_attention_forward.5} parent=5 // pred_check
      %p375 = pneg %p374
    $region62: #{net_attention_forward.5} parent=5 // pred_check_branch
      %377 = sbr.rel (%p375) target = $region64
    $region63: #{net_attention_forward.5} parent=5 // pred_region
      // Predicated region
      $region65: #{net_attention_forward.5} parent=63 // pred_check
        %p378 = pneg %p39
      $region66: #{net_attention_forward.5} parent=63 // pred_check_branch
        %380 = sbr.rel (%p378) target = $region68
      $region67: #{net_attention_forward.5} parent=63 // pred_region
        %p381 = scmp.lt.s32.totalorder %s19, 1
        %s382 = scalar_select %p381, %s19, 1
        %s383 = smul.addr %s382, 8
        %s384 = scalar_lea.vmem %s0, %s383
      $region68: #{net_attention_forward.5} parent=63 // pred_fallthru
        _
    $region64: #{net_attention_forward.5} parent=5 // pred_fallthru
      _
    %p385 = scmp.le.s32.totalorder 1, %s19
    %p386 = scmp.lt.s32.totalorder %s19, 3
    %p387 = pnand %p385, %p386
    %p388 = pneg %p387
    // Predicated region
    $region69: #{net_attention_forward.5} parent=5 // pred_check
      _
    $region70: #{net_attention_forward.5} parent=5 // pred_check_branch
      %390 = sbr.rel (%p387) target = $region72
    $region71: #{net_attention_forward.5} parent=5 // pred_region
      %s391 = ssub.s32 %s19, 1
      %p392 = scmp.lt.s32.totalorder %s24, 1
      %s393 = scalar_select %p392, %s24, 1
      %s394 = smul.addr %s393, 8
      %s395 = scalar_lea.vmem %s0, %s394
      %p396 = pneg %p45
      %p397 = pneg %p42
      %p398 = pneg %p66
      %p399 = pneg %p63
      %p400 = pneg %p87
      %p401 = pneg %p84
      %p402 = pneg %p108
      %p403 = pneg %p105
      %p404 = pneg %p129
      %p405 = pneg %p126
      %p406 = pneg %p150
      %p407 = pneg %p147
      %p408 = pneg %p171
      %p409 = pneg %p168
      %p410 = pneg %p192
      %p411 = pneg %p189
      %p412 = pneg %p213
      %p413 = pneg %p210
      %p414 = pneg %p234
      %p415 = pneg %p231
      %p416 = pneg %p255
      %p417 = pneg %p252
      %p418 = pneg %p276
      %p419 = pneg %p273
      %p420 = pneg %p297
      %p421 = pneg %p294
      %p422 = pneg %p323
      %p423 = pneg %p320
      %p424 = scmp.lt.s32.totalorder %s24, 1
      %s425 = scalar_select %p424, %s24, 1
      %s426 = smul.addr %s425, 8
      %s427 = scalar_lea.vmem %s13, %s426
      %p428 = scmp.lt.s32.totalorder %s24, 1
      %s429 = scalar_select %p428, %s24, 1
      %s430 = smul.addr %s429, 8
      %s431 = scalar_lea.vmem %s0, %s430
      %p432 = scmp.lt.s32.totalorder %s24, 1
      %s433 = scalar_select %p432, %s24, 1
      %s434 = smul.addr %s433, 8
      %s435 = scalar_lea.vmem %s13, %s434
      %v436 = vld [vmem:[%s431] sm:$0xff]
      %v437 = vld [vmem:[%s1] sm:$0xff]
      %v438 = vld [vmem:[%s1 + $0x8] sm:$0xff]
      %v439 = vld [vmem:[%s1 + $0x10] sm:$0xff]
      %v440 = vld [vmem:[%s1 + $0x18] sm:$0xff]
      %v441 = vld [vmem:[%s2] sm:$0x1]
      %v443 = vlaneseq
      %v444 = vshrl.u32 %v443, 7
      %v445 = vsub.s32 0, %v444
      %v446 = vrot.slane %v441, %v445
      %vm448 = vcmask 261120
      %v450 = vsel %vm448, %v436, 0
      %452 = vmatprep.subr.mxu0 0.0
      %453 = vmatpush1.msra.mxu0 0.0
      %454 = vmatprep.subr.mxu0 0.0
      %455 = vmatpush1.msra.mxu0 0.0
      %456 = vmatprep.subr.mxu0 0.0
      %457 = vmatpush1.msra.mxu0 0.0
      %458 = vmatprep.subr.mxu0 0.0
      %459 = vmatpush1.msra.mxu0 0.0
      %460 = vmatprep.subr.mxu0 0.0
      %461 = vmatpush1.msra.mxu0 0.0
      %462 = vmatprep.subr.mxu0 0.0
      %463 = vmatpush1.msra.mxu0 0.0
      %464 = vmatprep.subr.mxu0 0.0
      %465 = vmatpush1.msra.mxu0 0.0
      %466 = vmatprep.subr.mxu0 0.0
      %467 = vmatpush1.msra.mxu0 0.0
      %468 = vmatprep.subr.mxu0 0.0
      %469 = vmatpush1.msra.mxu0 0.0
      %470 = vmatprep.subr.mxu0 0.0
      %471 = vmatpush1.msra.mxu0 0.0
      %472 = vmatprep.subr.mxu0 0.0
      %473 = vmatpush1.msra.mxu0 0.0
      %474 = vmatprep.subr.mxu0 0.0
      %475 = vmatpush1.msra.mxu0 0.0
      %476 = vmatprep.subr.mxu0 0.0
      %477 = vmatpush1.msra.mxu0 %v440
      %478 = vmatprep.subr.mxu0 0.0
      %479 = vmatpush1.msra.mxu0 %v439
      %480 = vmatprep.subr.mxu0 0.0
      %481 = vmatpush1.msra.mxu0 %v438
      %482 = vmatprep.subr.mxu0 0.0
      %483 = vmatpush1.msra.mxu0 %v437
      %484 = vmatprep.subr.mxu0 0.0
      %485 = vmatpush2.msra.mxu0 0.0
      %486 = vmatprep.subr.mxu0 0.0
      %487 = vmatpush2.msra.mxu0 0.0
      %488 = vmatprep.subr.mxu0 0.0
      %489 = vmatpush2.msra.mxu0 0.0
      %490 = vmatprep.subr.mxu0 0.0
      %491 = vmatpush2.msra.mxu0 0.0
      %492 = vmatprep.subr.mxu0 0.0
      %493 = vmatpush2.msra.mxu0 0.0
      %494 = vmatprep.subr.mxu0 0.0
      %495 = vmatpush2.msra.mxu0 0.0
      %496 = vmatprep.subr.mxu0 0.0
      %497 = vmatpush2.msra.mxu0 0.0
      %498 = vmatprep.subr.mxu0 0.0
      %499 = vmatpush2.msra.mxu0 0.0
      %500 = vmatprep.subr.mxu0 0.0
      %501 = vmatpush2.msra.mxu0 0.0
      %502 = vmatprep.subr.mxu0 0.0
      %503 = vmatpush2.msra.mxu0 0.0
      %504 = vmatprep.subr.mxu0 0.0
      %505 = vmatpush2.msra.mxu0 0.0
      %506 = vmatprep.subr.mxu0 0.0
      %507 = vmatpush2.msra.mxu0 0.0
      %508 = vmatprep.subr.mxu0 0.0
      %509 = vmatpush2.msra.mxu0 0.0
      %510 = vmatprep.subr.mxu0 0.0
      %511 = vmatpush2.msra.mxu0 0.0
      %512 = vmatprep.subr.mxu0 0.0
      %513 = vmatpush2.msra.mxu0 0.0
      %514 = vmatprep.subr.mxu0 0.0
      %515 = vmatpush2.msra.mxu0 0.0
      %516 = vmatprep.mubr.f32.mxu0 0.0
      %517 = vmatmul.mubr.f32.gmra.mxu0 %v450
      %v518 = vpop.f32.mrf.mxu0
      %v519 = vadd.f32 %v446, %v518
      %v520 = vpop.f32.mrf.mxu0
      %521 = vdwg.mxu0
      %523 = vrot.lane.b32.xlu0 %v519, 96
      %v524 = vpop.permute.xlu0 %523
      %vm525 = vcmask 64512
      %v526 = vsel %vm525, %v519, 0
      %v528 = vsel %vm525, %v524, 0
      %530 = vmatprep.subr.mxu0 0.0
      %531 = vmatpush1.xpose.msra.mxu0 0.0
      %532 = vmatprep.subr.mxu0 0.0
      %533 = vmatpush1.xpose.msra.mxu0 0.0
      %534 = vmatprep.subr.mxu0 0.0
      %535 = vmatpush1.xpose.msra.mxu0 0.0
      %536 = vmatprep.subr.mxu0 0.0
      %537 = vmatpush1.xpose.msra.mxu0 0.0
      %538 = vmatprep.subr.mxu0 0.0
      %539 = vmatpush1.xpose.msra.mxu0 0.0
      %540 = vmatprep.subr.mxu0 0.0
      %541 = vmatpush1.xpose.msra.mxu0 0.0
      %542 = vmatprep.subr.mxu0 0.0
      %543 = vmatpush1.xpose.msra.mxu0 0.0
      %544 = vmatprep.subr.mxu0 0.0
      %545 = vmatpush1.xpose.msra.mxu0 0.0
      %546 = vmatprep.subr.mxu0 0.0
      %547 = vmatpush1.xpose.msra.mxu0 0.0
      %548 = vmatprep.subr.mxu0 0.0
      %549 = vmatpush1.xpose.msra.mxu0 0.0
      %550 = vmatprep.subr.mxu0 0.0
      %551 = vmatpush1.xpose.msra.mxu0 0.0
      %552 = vmatprep.subr.mxu0 0.0
      %553 = vmatpush1.xpose.msra.mxu0 0.0
      %554 = vmatprep.subr.mxu0 0.0
      %555 = vmatpush1.xpose.msra.mxu0 0.0
      %556 = vmatprep.subr.mxu0 0.0
      %557 = vmatpush1.xpose.msra.mxu0 0.0
      %558 = vmatprep.subr.mxu0 0.0
      %559 = vmatpush1.xpose.msra.mxu0 0.0
      %560 = vmatprep.subr.mxu0 0.0
      %561 = vmatpush1.xpose.msra.mxu0 %v528
      %562 = vmatprep.subr.mxu0 0.0
      %563 = vmatpush2.xpose.msra.mxu0 0.0
      %564 = vmatprep.subr.mxu0 0.0
      %565 = vmatpush2.xpose.msra.mxu0 0.0
      %566 = vmatprep.subr.mxu0 0.0
      %567 = vmatpush2.xpose.msra.mxu0 0.0
      %568 = vmatprep.subr.mxu0 0.0
      %569 = vmatpush2.xpose.msra.mxu0 0.0
      %570 = vmatprep.subr.mxu0 0.0
      %571 = vmatpush2.xpose.msra.mxu0 0.0
      %572 = vmatprep.subr.mxu0 0.0
      %573 = vmatpush2.xpose.msra.mxu0 0.0
      %574 = vmatprep.subr.mxu0 0.0
      %575 = vmatpush2.xpose.msra.mxu0 0.0
      %576 = vmatprep.subr.mxu0 0.0
      %577 = vmatpush2.xpose.msra.mxu0 0.0
      %578 = vmatprep.subr.mxu0 0.0
      %579 = vmatpush2.xpose.msra.mxu0 0.0
      %580 = vmatprep.subr.mxu0 0.0
      %581 = vmatpush2.xpose.msra.mxu0 0.0
      %582 = vmatprep.subr.mxu0 0.0
      %583 = vmatpush2.xpose.msra.mxu0 0.0
      %584 = vmatprep.subr.mxu0 0.0
      %585 = vmatpush2.xpose.msra.mxu0 0.0
      %586 = vmatprep.subr.mxu0 0.0
      %587 = vmatpush2.xpose.msra.mxu0 0.0
      %588 = vmatprep.subr.mxu0 0.0
      %589 = vmatpush2.xpose.msra.mxu0 0.0
      %590 = vmatprep.subr.mxu0 0.0
      %591 = vmatpush2.xpose.msra.mxu0 0.0
      %592 = vmatprep.subr.mxu0 0.0
      %593 = vmatpush2.xpose.msra.mxu0 0.0
      %594 = vmatprep.mubr.f32.mxu0 0.0
      %595 = vmatmul.mubr.f32.gmra.mxu0 %v526
      %v596 = vpop.f32.mrf.mxu0
      %v597 = vadd.f32 0.0, %v596
      %v598 = vpop.f32.mrf.mxu0
      %599 = vdwg.mxu0
      %v600 = vmul.f32 %v597, 0.35355338
      %v601 = vsel %vm525, %v600, -inf
      %602 = vmax.xlane.f32.xlu0 %v601
      %v603 = vpop.xlane.xlu0 %602
      %v604 = vsub.f32 %v600, %v603
      %v605 = vmul.f32 %v604, 1.442695
      %v606 = vpow.pop %v605
      %v607 = vsel %vm525, %v606, 0.0
      %608 = vadd.xlane.f32.xlu0 %v607
      %v609 = vpop.xlane.xlu0 %608
      %v610 = vrcp.pop %v609
      %v611 = vmul.f32 %v606, %v610
      %612 = vrot.lane.b32.xlu0 %v519, 64
      %v613 = vpop.permute.xlu0 %612
      %v616 = vsel %vm525, %v611, 0
      %618 = vmatprep.subr.mxu0 0.0
      %619 = vmatpush1.msra.mxu0 0.0
      %620 = vmatprep.subr.mxu0 0.0
      %621 = vmatpush1.msra.mxu0 0.0
      %622 = vmatprep.subr.mxu0 0.0
      %623 = vmatpush1.msra.mxu0 0.0
      %624 = vmatprep.subr.mxu0 0.0
      %625 = vmatpush1.msra.mxu0 0.0
      %626 = vmatprep.subr.mxu0 0.0
      %627 = vmatpush1.msra.mxu0 0.0
      %628 = vmatprep.subr.mxu0 0.0
      %629 = vmatpush1.msra.mxu0 0.0
      %630 = vmatprep.subr.mxu0 0.0
      %631 = vmatpush1.msra.mxu0 0.0
      %632 = vmatprep.subr.mxu0 0.0
      %633 = vmatpush1.msra.mxu0 0.0
      %634 = vmatprep.subr.mxu0 0.0
      %635 = vmatpush1.msra.mxu0 0.0
      %636 = vmatprep.subr.mxu0 0.0
      %637 = vmatpush1.msra.mxu0 0.0
      %638 = vmatprep.subr.mxu0 0.0
      %639 = vmatpush1.msra.mxu0 0.0
      %640 = vmatprep.subr.mxu0 0.0
      %641 = vmatpush1.msra.mxu0 0.0
      %642 = vmatprep.subr.mxu0 0.0
      %643 = vmatpush1.msra.mxu0 0.0
      %644 = vmatprep.subr.mxu0 0.0
      %645 = vmatpush1.msra.mxu0 0.0
      %646 = vmatprep.subr.mxu0 0.0
      %647 = vmatpush1.msra.mxu0 0.0
      %648 = vmatprep.subr.mxu0 0.0
      %649 = vmatpush1.msra.mxu0 %v613
      %650 = vmatprep.subr.mxu0 0.0
      %651 = vmatpush2.msra.mxu0 0.0
      %652 = vmatprep.subr.mxu0 0.0
      %653 = vmatpush2.msra.mxu0 0.0
      %654 = vmatprep.subr.mxu0 0.0
      %655 = vmatpush2.msra.mxu0 0.0
      %656 = vmatprep.subr.mxu0 0.0
      %657 = vmatpush2.msra.mxu0 0.0
      %658 = vmatprep.subr.mxu0 0.0
      %659 = vmatpush2.msra.mxu0 0.0
      %660 = vmatprep.subr.mxu0 0.0
      %661 = vmatpush2.msra.mxu0 0.0
      %662 = vmatprep.subr.mxu0 0.0
      %663 = vmatpush2.msra.mxu0 0.0
      %664 = vmatprep.subr.mxu0 0.0
      %665 = vmatpush2.msra.mxu0 0.0
      %666 = vmatprep.subr.mxu0 0.0
      %667 = vmatpush2.msra.mxu0 0.0
      %668 = vmatprep.subr.mxu0 0.0
      %669 = vmatpush2.msra.mxu0 0.0
      %670 = vmatprep.subr.mxu0 0.0
      %671 = vmatpush2.msra.mxu0 0.0
      %672 = vmatprep.subr.mxu0 0.0
      %673 = vmatpush2.msra.mxu0 0.0
      %674 = vmatprep.subr.mxu0 0.0
      %675 = vmatpush2.msra.mxu0 0.0
      %676 = vmatprep.subr.mxu0 0.0
      %677 = vmatpush2.msra.mxu0 0.0
      %678 = vmatprep.subr.mxu0 0.0
      %679 = vmatpush2.msra.mxu0 0.0
      %680 = vmatprep.subr.mxu0 0.0
      %681 = vmatpush2.msra.mxu0 0.0
      %682 = vmatprep.mubr.f32.mxu0 0.0
      %683 = vmatmul.mubr.f32.gmra.mxu0 %v616
      %v684 = vpop.f32.mrf.mxu0
      %v685 = vadd.f32 0.0, %v684
      %v686 = vpop.f32.mrf.mxu0
      %687 = vdwg.mxu0
      %688 = vrot.lane.b32.xlu0 %v519, 120
      %v689 = vpop.permute.xlu0 %688
      %690 = vrot.lane.b32.xlu0 %v519, 88
      %v691 = vpop.permute.xlu0 %690
      %v692 = vsel %vm525, %v689, 0
      %v694 = vsel %vm525, %v691, 0
      %696 = vmatprep.subr.mxu0 0.0
      %697 = vmatpush1.xpose.msra.mxu0 0.0
      %698 = vmatprep.subr.mxu0 0.0
      %699 = vmatpush1.xpose.msra.mxu0 0.0
      %700 = vmatprep.subr.mxu0 0.0
      %701 = vmatpush1.xpose.msra.mxu0 0.0
      %702 = vmatprep.subr.mxu0 0.0
      %703 = vmatpush1.xpose.msra.mxu0 0.0
      %704 = vmatprep.subr.mxu0 0.0
      %705 = vmatpush1.xpose.msra.mxu0 0.0
      %706 = vmatprep.subr.mxu0 0.0
      %707 = vmatpush1.xpose.msra.mxu0 0.0
      %708 = vmatprep.subr.mxu0 0.0
      %709 = vmatpush1.xpose.msra.mxu0 0.0
      %710 = vmatprep.subr.mxu0 0.0
      %711 = vmatpush1.xpose.msra.mxu0 0.0
      %712 = vmatprep.subr.mxu0 0.0
      %713 = vmatpush1.xpose.msra.mxu0 0.0
      %714 = vmatprep.subr.mxu0 0.0
      %715 = vmatpush1.xpose.msra.mxu0 0.0
      %716 = vmatprep.subr.mxu0 0.0
      %717 = vmatpush1.xpose.msra.mxu0 0.0
      %718 = vmatprep.subr.mxu0 0.0
      %719 = vmatpush1.xpose.msra.mxu0 0.0
      %720 = vmatprep.subr.mxu0 0.0
      %721 = vmatpush1.xpose.msra.mxu0 0.0
      %722 = vmatprep.subr.mxu0 0.0
      %723 = vmatpush1.xpose.msra.mxu0 0.0
      %724 = vmatprep.subr.mxu0 0.0
      %725 = vmatpush1.xpose.msra.mxu0 0.0
      %726 = vmatprep.subr.mxu0 0.0
      %727 = vmatpush1.xpose.msra.mxu0 %v694
      %728 = vmatprep.subr.mxu0 0.0
      %729 = vmatpush2.xpose.msra.mxu0 0.0
      %730 = vmatprep.subr.mxu0 0.0
      %731 = vmatpush2.xpose.msra.mxu0 0.0
      %732 = vmatprep.subr.mxu0 0.0
      %733 = vmatpush2.xpose.msra.mxu0 0.0
      %734 = vmatprep.subr.mxu0 0.0
      %735 = vmatpush2.xpose.msra.mxu0 0.0
      %736 = vmatprep.subr.mxu0 0.0
      %737 = vmatpush2.xpose.msra.mxu0 0.0
      %738 = vmatprep.subr.mxu0 0.0
      %739 = vmatpush2.xpose.msra.mxu0 0.0
      %740 = vmatprep.subr.mxu0 0.0
      %741 = vmatpush2.xpose.msra.mxu0 0.0
      %742 = vmatprep.subr.mxu0 0.0
      %743 = vmatpush2.xpose.msra.mxu0 0.0
      %744 = vmatprep.subr.mxu0 0.0
      %745 = vmatpush2.xpose.msra.mxu0 0.0
      %746 = vmatprep.subr.mxu0 0.0
      %747 = vmatpush2.xpose.msra.mxu0 0.0
      %748 = vmatprep.subr.mxu0 0.0
      %749 = vmatpush2.xpose.msra.mxu0 0.0
      %750 = vmatprep.subr.mxu0 0.0
      %751 = vmatpush2.xpose.msra.mxu0 0.0
      %752 = vmatprep.subr.mxu0 0.0
      %753 = vmatpush2.xpose.msra.mxu0 0.0
      %754 = vmatprep.subr.mxu0 0.0
      %755 = vmatpush2.xpose.msra.mxu0 0.0
      %756 = vmatprep.subr.mxu0 0.0
      %757 = vmatpush2.xpose.msra.mxu0 0.0
      %758 = vmatprep.subr.mxu0 0.0
      %759 = vmatpush2.xpose.msra.mxu0 0.0
      %760 = vmatprep.mubr.f32.mxu0 0.0
      %761 = vmatmul.mubr.f32.gmra.mxu0 %v692
      %v762 = vpop.f32.mrf.mxu0
      %v763 = vadd.f32 0.0, %v762
      %v764 = vpop.f32.mrf.mxu0
      %765 = vdwg.mxu0
      %v766 = vmul.f32 %v763, 0.35355338
      %v767 = vsel %vm525, %v766, -inf
      %768 = vmax.xlane.f32.xlu0 %v767
      %v769 = vpop.xlane.xlu0 %768
      %v770 = vsub.f32 %v766, %v769
      %v771 = vmul.f32 %v770, 1.442695
      %v772 = vpow.pop %v771
      %v773 = vsel %vm525, %v772, 0.0
      %774 = vadd.xlane.f32.xlu0 %v773
      %v775 = vpop.xlane.xlu0 %774
      %v776 = vrcp.pop %v775
      %v777 = vmul.f32 %v772, %v776
      %778 = vrot.lane.b32.xlu0 %v519, 56
      %v779 = vpop.permute.xlu0 %778
      %v782 = vsel %vm525, %v777, 0
      %784 = vmatprep.subr.mxu0 0.0
      %785 = vmatpush1.msra.mxu0 0.0
      %786 = vmatprep.subr.mxu0 0.0
      %787 = vmatpush1.msra.mxu0 0.0
      %788 = vmatprep.subr.mxu0 0.0
      %789 = vmatpush1.msra.mxu0 0.0
      %790 = vmatprep.subr.mxu0 0.0
      %791 = vmatpush1.msra.mxu0 0.0
      %792 = vmatprep.subr.mxu0 0.0
      %793 = vmatpush1.msra.mxu0 0.0
      %794 = vmatprep.subr.mxu0 0.0
      %795 = vmatpush1.msra.mxu0 0.0
      %796 = vmatprep.subr.mxu0 0.0
      %797 = vmatpush1.msra.mxu0 0.0
      %798 = vmatprep.subr.mxu0 0.0
      %799 = vmatpush1.msra.mxu0 0.0
      %800 = vmatprep.subr.mxu0 0.0
      %801 = vmatpush1.msra.mxu0 0.0
      %802 = vmatprep.subr.mxu0 0.0
      %803 = vmatpush1.msra.mxu0 0.0
      %804 = vmatprep.subr.mxu0 0.0
      %805 = vmatpush1.msra.mxu0 0.0
      %806 = vmatprep.subr.mxu0 0.0
      %807 = vmatpush1.msra.mxu0 0.0
      %808 = vmatprep.subr.mxu0 0.0
      %809 = vmatpush1.msra.mxu0 0.0
      %810 = vmatprep.subr.mxu0 0.0
      %811 = vmatpush1.msra.mxu0 0.0
      %812 = vmatprep.subr.mxu0 0.0
      %813 = vmatpush1.msra.mxu0 0.0
      %814 = vmatprep.subr.mxu0 0.0
      %815 = vmatpush1.msra.mxu0 %v779
      %816 = vmatprep.subr.mxu0 0.0
      %817 = vmatpush2.msra.mxu0 0.0
      %818 = vmatprep.subr.mxu0 0.0
      %819 = vmatpush2.msra.mxu0 0.0
      %820 = vmatprep.subr.mxu0 0.0
      %821 = vmatpush2.msra.mxu0 0.0
      %822 = vmatprep.subr.mxu0 0.0
      %823 = vmatpush2.msra.mxu0 0.0
      %824 = vmatprep.subr.mxu0 0.0
      %825 = vmatpush2.msra.mxu0 0.0
      %826 = vmatprep.subr.mxu0 0.0
      %827 = vmatpush2.msra.mxu0 0.0
      %828 = vmatprep.subr.mxu0 0.0
      %829 = vmatpush2.msra.mxu0 0.0
      %830 = vmatprep.subr.mxu0 0.0
      %831 = vmatpush2.msra.mxu0 0.0
      %832 = vmatprep.subr.mxu0 0.0
      %833 = vmatpush2.msra.mxu0 0.0
      %834 = vmatprep.subr.mxu0 0.0
      %835 = vmatpush2.msra.mxu0 0.0
      %836 = vmatprep.subr.mxu0 0.0
      %837 = vmatpush2.msra.mxu0 0.0
      %838 = vmatprep.subr.mxu0 0.0
      %839 = vmatpush2.msra.mxu0 0.0
      %840 = vmatprep.subr.mxu0 0.0
      %841 = vmatpush2.msra.mxu0 0.0
      %842 = vmatprep.subr.mxu0 0.0
      %843 = vmatpush2.msra.mxu0 0.0
      %844 = vmatprep.subr.mxu0 0.0
      %845 = vmatpush2.msra.mxu0 0.0
      %846 = vmatprep.subr.mxu0 0.0
      %847 = vmatpush2.msra.mxu0 0.0
      %848 = vmatprep.mubr.f32.mxu0 0.0
      %849 = vmatmul.mubr.f32.gmra.mxu0 %v782
      %v850 = vpop.f32.mrf.mxu0
      %v851 = vadd.f32 0.0, %v850
      %v852 = vpop.f32.mrf.mxu0
      %853 = vdwg.mxu0
      %854 = vrot.lane.b32.xlu0 %v519, 112
      %v855 = vpop.permute.xlu0 %854
      %856 = vrot.lane.b32.xlu0 %v519, 80
      %v857 = vpop.permute.xlu0 %856
      %v858 = vsel %vm525, %v855, 0
      %v860 = vsel %vm525, %v857, 0
      %862 = vmatprep.subr.mxu0 0.0
      %863 = vmatpush1.xpose.msra.mxu0 0.0
      %864 = vmatprep.subr.mxu0 0.0
      %865 = vmatpush1.xpose.msra.mxu0 0.0
      %866 = vmatprep.subr.mxu0 0.0
      %867 = vmatpush1.xpose.msra.mxu0 0.0
      %868 = vmatprep.subr.mxu0 0.0
      %869 = vmatpush1.xpose.msra.mxu0 0.0
      %870 = vmatprep.subr.mxu0 0.0
      %871 = vmatpush1.xpose.msra.mxu0 0.0
      %872 = vmatprep.subr.mxu0 0.0
      %873 = vmatpush1.xpose.msra.mxu0 0.0
      %874 = vmatprep.subr.mxu0 0.0
      %875 = vmatpush1.xpose.msra.mxu0 0.0
      %876 = vmatprep.subr.mxu0 0.0
      %877 = vmatpush1.xpose.msra.mxu0 0.0
      %878 = vmatprep.subr.mxu0 0.0
      %879 = vmatpush1.xpose.msra.mxu0 0.0
      %880 = vmatprep.subr.mxu0 0.0
      %881 = vmatpush1.xpose.msra.mxu0 0.0
      %882 = vmatprep.subr.mxu0 0.0
      %883 = vmatpush1.xpose.msra.mxu0 0.0
      %884 = vmatprep.subr.mxu0 0.0
      %885 = vmatpush1.xpose.msra.mxu0 0.0
      %886 = vmatprep.subr.mxu0 0.0
      %887 = vmatpush1.xpose.msra.mxu0 0.0
      %888 = vmatprep.subr.mxu0 0.0
      %889 = vmatpush1.xpose.msra.mxu0 0.0
      %890 = vmatprep.subr.mxu0 0.0
      %891 = vmatpush1.xpose.msra.mxu0 0.0
      %892 = vmatprep.subr.mxu0 0.0
      %893 = vmatpush1.xpose.msra.mxu0 %v860
      %894 = vmatprep.subr.mxu0 0.0
      %895 = vmatpush2.xpose.msra.mxu0 0.0
      %896 = vmatprep.subr.mxu0 0.0
      %897 = vmatpush2.xpose.msra.mxu0 0.0
      %898 = vmatprep.subr.mxu0 0.0
      %899 = vmatpush2.xpose.msra.mxu0 0.0
      %900 = vmatprep.subr.mxu0 0.0
      %901 = vmatpush2.xpose.msra.mxu0 0.0
      %902 = vmatprep.subr.mxu0 0.0
      %903 = vmatpush2.xpose.msra.mxu0 0.0
      %904 = vmatprep.subr.mxu0 0.0
      %905 = vmatpush2.xpose.msra.mxu0 0.0
      %906 = vmatprep.subr.mxu0 0.0
      %907 = vmatpush2.xpose.msra.mxu0 0.0
      %908 = vmatprep.subr.mxu0 0.0
      %909 = vmatpush2.xpose.msra.mxu0 0.0
      %910 = vmatprep.subr.mxu0 0.0
      %911 = vmatpush2.xpose.msra.mxu0 0.0
      %912 = vmatprep.subr.mxu0 0.0
      %913 = vmatpush2.xpose.msra.mxu0 0.0
      %914 = vmatprep.subr.mxu0 0.0
      %915 = vmatpush2.xpose.msra.mxu0 0.0
      %916 = vmatprep.subr.mxu0 0.0
      %917 = vmatpush2.xpose.msra.mxu0 0.0
      %918 = vmatprep.subr.mxu0 0.0
      %919 = vmatpush2.xpose.msra.mxu0 0.0
      %920 = vmatprep.subr.mxu0 0.0
      %921 = vmatpush2.xpose.msra.mxu0 0.0
      %922 = vmatprep.subr.mxu0 0.0
      %923 = vmatpush2.xpose.msra.mxu0 0.0
      %924 = vmatprep.subr.mxu0 0.0
      %925 = vmatpush2.xpose.msra.mxu0 0.0
      %926 = vmatprep.mubr.f32.mxu0 0.0
      %927 = vmatmul.mubr.f32.gmra.mxu0 %v858
      %v928 = vpop.f32.mrf.mxu0
      %v929 = vadd.f32 0.0, %v928
      %v930 = vpop.f32.mrf.mxu0
      %931 = vdwg.mxu0
      %v932 = vmul.f32 %v929, 0.35355338
      %v933 = vsel %vm525, %v932, -inf
      %934 = vmax.xlane.f32.xlu0 %v933
      %v935 = vpop.xlane.xlu0 %934
      %v936 = vsub.f32 %v932, %v935
      %v937 = vmul.f32 %v936, 1.442695
      %v938 = vpow.pop %v937
      %v939 = vsel %vm525, %v938, 0.0
      %940 = vadd.xlane.f32.xlu0 %v939
      %v941 = vpop.xlane.xlu0 %940
      %v942 = vrcp.pop %v941
      %v943 = vmul.f32 %v938, %v942
      %944 = vrot.lane.b32.xlu0 %v519, 48
      %v945 = vpop.permute.xlu0 %944
      %v948 = vsel %vm525, %v943, 0
      %950 = vmatprep.subr.mxu0 0.0
      %951 = vmatpush1.msra.mxu0 0.0
      %952 = vmatprep.subr.mxu0 0.0
      %953 = vmatpush1.msra.mxu0 0.0
      %954 = vmatprep.subr.mxu0 0.0
      %955 = vmatpush1.msra.mxu0 0.0
      %956 = vmatprep.subr.mxu0 0.0
      %957 = vmatpush1.msra.mxu0 0.0
      %958 = vmatprep.subr.mxu0 0.0
      %959 = vmatpush1.msra.mxu0 0.0
      %960 = vmatprep.subr.mxu0 0.0
      %961 = vmatpush1.msra.mxu0 0.0
      %962 = vmatprep.subr.mxu0 0.0
      %963 = vmatpush1.msra.mxu0 0.0
      %964 = vmatprep.subr.mxu0 0.0
      %965 = vmatpush1.msra.mxu0 0.0
      %966 = vmatprep.subr.mxu0 0.0
      %967 = vmatpush1.msra.mxu0 0.0
      %968 = vmatprep.subr.mxu0 0.0
      %969 = vmatpush1.msra.mxu0 0.0
      %970 = vmatprep.subr.mxu0 0.0
      %971 = vmatpush1.msra.mxu0 0.0
      %972 = vmatprep.subr.mxu0 0.0
      %973 = vmatpush1.msra.mxu0 0.0
      %974 = vmatprep.subr.mxu0 0.0
      %975 = vmatpush1.msra.mxu0 0.0
      %976 = vmatprep.subr.mxu0 0.0
      %977 = vmatpush1.msra.mxu0 0.0
      %978 = vmatprep.subr.mxu0 0.0
      %979 = vmatpush1.msra.mxu0 0.0
      %980 = vmatprep.subr.mxu0 0.0
      %981 = vmatpush1.msra.mxu0 %v945
      %982 = vmatprep.subr.mxu0 0.0
      %983 = vmatpush2.msra.mxu0 0.0
      %984 = vmatprep.subr.mxu0 0.0
      %985 = vmatpush2.msra.mxu0 0.0
      %986 = vmatprep.subr.mxu0 0.0
      %987 = vmatpush2.msra.mxu0 0.0
      %988 = vmatprep.subr.mxu0 0.0
      %989 = vmatpush2.msra.mxu0 0.0
      %990 = vmatprep.subr.mxu0 0.0
      %991 = vmatpush2.msra.mxu0 0.0
      %992 = vmatprep.subr.mxu0 0.0
      %993 = vmatpush2.msra.mxu0 0.0
      %994 = vmatprep.subr.mxu0 0.0
      %995 = vmatpush2.msra.mxu0 0.0
      %996 = vmatprep.subr.mxu0 0.0
      %997 = vmatpush2.msra.mxu0 0.0
      %998 = vmatprep.subr.mxu0 0.0
      %999 = vmatpush2.msra.mxu0 0.0
      %1000 = vmatprep.subr.mxu0 0.0
      %1001 = vmatpush2.msra.mxu0 0.0
      %1002 = vmatprep.subr.mxu0 0.0
      %1003 = vmatpush2.msra.mxu0 0.0
      %1004 = vmatprep.subr.mxu0 0.0
      %1005 = vmatpush2.msra.mxu0 0.0
      %1006 = vmatprep.subr.mxu0 0.0
      %1007 = vmatpush2.msra.mxu0 0.0
      %1008 = vmatprep.subr.mxu0 0.0
      %1009 = vmatpush2.msra.mxu0 0.0
      %1010 = vmatprep.subr.mxu0 0.0
      %1011 = vmatpush2.msra.mxu0 0.0
      %1012 = vmatprep.subr.mxu0 0.0
      %1013 = vmatpush2.msra.mxu0 0.0
      %1014 = vmatprep.mubr.f32.mxu0 0.0
      %1015 = vmatmul.mubr.f32.gmra.mxu0 %v948
      %v1016 = vpop.f32.mrf.mxu0
      %v1017 = vadd.f32 0.0, %v1016
      %v1018 = vpop.f32.mrf.mxu0
      %1019 = vdwg.mxu0
      %1020 = vrot.lane.b32.xlu0 %v519, 104
      %v1021 = vpop.permute.xlu0 %1020
      %1022 = vrot.lane.b32.xlu0 %v519, 72
      %v1023 = vpop.permute.xlu0 %1022
      %v1024 = vsel %vm525, %v1021, 0
      %v1026 = vsel %vm525, %v1023, 0
      %1028 = vmatprep.subr.mxu0 0.0
      %1029 = vmatpush1.xpose.msra.mxu0 0.0
      %1030 = vmatprep.subr.mxu0 0.0
      %1031 = vmatpush1.xpose.msra.mxu0 0.0
      %1032 = vmatprep.subr.mxu0 0.0
      %1033 = vmatpush1.xpose.msra.mxu0 0.0
      %1034 = vmatprep.subr.mxu0 0.0
      %1035 = vmatpush1.xpose.msra.mxu0 0.0
      %1036 = vmatprep.subr.mxu0 0.0
      %1037 = vmatpush1.xpose.msra.mxu0 0.0
      %1038 = vmatprep.subr.mxu0 0.0
      %1039 = vmatpush1.xpose.msra.mxu0 0.0
      %1040 = vmatprep.subr.mxu0 0.0
      %1041 = vmatpush1.xpose.msra.mxu0 0.0
      %1042 = vmatprep.subr.mxu0 0.0
      %1043 = vmatpush1.xpose.msra.mxu0 0.0
      %1044 = vmatprep.subr.mxu0 0.0
      %1045 = vmatpush1.xpose.msra.mxu0 0.0
      %1046 = vmatprep.subr.mxu0 0.0
      %1047 = vmatpush1.xpose.msra.mxu0 0.0
      %1048 = vmatprep.subr.mxu0 0.0
      %1049 = vmatpush1.xpose.msra.mxu0 0.0
      %1050 = vmatprep.subr.mxu0 0.0
      %1051 = vmatpush1.xpose.msra.mxu0 0.0
      %1052 = vmatprep.subr.mxu0 0.0
      %1053 = vmatpush1.xpose.msra.mxu0 0.0
      %1054 = vmatprep.subr.mxu0 0.0
      %1055 = vmatpush1.xpose.msra.mxu0 0.0
      %1056 = vmatprep.subr.mxu0 0.0
      %1057 = vmatpush1.xpose.msra.mxu0 0.0
      %1058 = vmatprep.subr.mxu0 0.0
      %1059 = vmatpush1.xpose.msra.mxu0 %v1026
      %1060 = vmatprep.subr.mxu0 0.0
      %1061 = vmatpush2.xpose.msra.mxu0 0.0
      %1062 = vmatprep.subr.mxu0 0.0
      %1063 = vmatpush2.xpose.msra.mxu0 0.0
      %1064 = vmatprep.subr.mxu0 0.0
      %1065 = vmatpush2.xpose.msra.mxu0 0.0
      %1066 = vmatprep.subr.mxu0 0.0
      %1067 = vmatpush2.xpose.msra.mxu0 0.0
      %1068 = vmatprep.subr.mxu0 0.0
      %1069 = vmatpush2.xpose.msra.mxu0 0.0
      %1070 = vmatprep.subr.mxu0 0.0
      %1071 = vmatpush2.xpose.msra.mxu0 0.0
      %1072 = vmatprep.subr.mxu0 0.0
      %1073 = vmatpush2.xpose.msra.mxu0 0.0
      %1074 = vmatprep.subr.mxu0 0.0
      %1075 = vmatpush2.xpose.msra.mxu0 0.0
      %1076 = vmatprep.subr.mxu0 0.0
      %1077 = vmatpush2.xpose.msra.mxu0 0.0
      %1078 = vmatprep.subr.mxu0 0.0
      %1079 = vmatpush2.xpose.msra.mxu0 0.0
      %1080 = vmatprep.subr.mxu0 0.0
      %1081 = vmatpush2.xpose.msra.mxu0 0.0
      %1082 = vmatprep.subr.mxu0 0.0
      %1083 = vmatpush2.xpose.msra.mxu0 0.0
      %1084 = vmatprep.subr.mxu0 0.0
      %1085 = vmatpush2.xpose.msra.mxu0 0.0
      %1086 = vmatprep.subr.mxu0 0.0
      %1087 = vmatpush2.xpose.msra.mxu0 0.0
      %1088 = vmatprep.subr.mxu0 0.0
      %1089 = vmatpush2.xpose.msra.mxu0 0.0
      %1090 = vmatprep.subr.mxu0 0.0
      %1091 = vmatpush2.xpose.msra.mxu0 0.0
      %1092 = vmatprep.mubr.f32.mxu0 0.0
      %1093 = vmatmul.mubr.f32.gmra.mxu0 %v1024
      %v1094 = vpop.f32.mrf.mxu0
      %v1095 = vadd.f32 0.0, %v1094
      %v1096 = vpop.f32.mrf.mxu0
      %1097 = vdwg.mxu0
      %v1098 = vmul.f32 %v1095, 0.35355338
      %v1099 = vsel %vm525, %v1098, -inf
      %1100 = vmax.xlane.f32.xlu0 %v1099
      %v1101 = vpop.xlane.xlu0 %1100
      %v1102 = vsub.f32 %v1098, %v1101
      %v1103 = vmul.f32 %v1102, 1.442695
      %v1104 = vpow.pop %v1103
      %v1105 = vsel %vm525, %v1104, 0.0
      %1106 = vadd.xlane.f32.xlu0 %v1105
      %v1107 = vpop.xlane.xlu0 %1106
      %v1108 = vrcp.pop %v1107
      %v1109 = vmul.f32 %v1104, %v1108
      %1110 = vrot.lane.b32.xlu0 %v519, 40
      %v1111 = vpop.permute.xlu0 %1110
      %v1114 = vsel %vm525, %v1109, 0
      %1116 = vmatprep.subr.mxu0 0.0
      %1117 = vmatpush1.msra.mxu0 0.0
      %1118 = vmatprep.subr.mxu0 0.0
      %1119 = vmatpush1.msra.mxu0 0.0
      %1120 = vmatprep.subr.mxu0 0.0
      %1121 = vmatpush1.msra.mxu0 0.0
      %1122 = vmatprep.subr.mxu0 0.0
      %1123 = vmatpush1.msra.mxu0 0.0
      %1124 = vmatprep.subr.mxu0 0.0
      %1125 = vmatpush1.msra.mxu0 0.0
      %1126 = vmatprep.subr.mxu0 0.0
      %1127 = vmatpush1.msra.mxu0 0.0
      %1128 = vmatprep.subr.mxu0 0.0
      %1129 = vmatpush1.msra.mxu0 0.0
      %1130 = vmatprep.subr.mxu0 0.0
      %1131 = vmatpush1.msra.mxu0 0.0
      %1132 = vmatprep.subr.mxu0 0.0
      %1133 = vmatpush1.msra.mxu0 0.0
      %1134 = vmatprep.subr.mxu0 0.0
      %1135 = vmatpush1.msra.mxu0 0.0
      %1136 = vmatprep.subr.mxu0 0.0
      %1137 = vmatpush1.msra.mxu0 0.0
      %1138 = vmatprep.subr.mxu0 0.0
      %1139 = vmatpush1.msra.mxu0 0.0
      %1140 = vmatprep.subr.mxu0 0.0
      %1141 = vmatpush1.msra.mxu0 0.0
      %1142 = vmatprep.subr.mxu0 0.0
      %1143 = vmatpush1.msra.mxu0 0.0
      %1144 = vmatprep.subr.mxu0 0.0
      %1145 = vmatpush1.msra.mxu0 0.0
      %1146 = vmatprep.subr.mxu0 0.0
      %1147 = vmatpush1.msra.mxu0 %v1111
      %1148 = vmatprep.subr.mxu0 0.0
      %1149 = vmatpush2.msra.mxu0 0.0
      %1150 = vmatprep.subr.mxu0 0.0
      %1151 = vmatpush2.msra.mxu0 0.0
      %1152 = vmatprep.subr.mxu0 0.0
      %1153 = vmatpush2.msra.mxu0 0.0
      %1154 = vmatprep.subr.mxu0 0.0
      %1155 = vmatpush2.msra.mxu0 0.0
      %1156 = vmatprep.subr.mxu0 0.0
      %1157 = vmatpush2.msra.mxu0 0.0
      %1158 = vmatprep.subr.mxu0 0.0
      %1159 = vmatpush2.msra.mxu0 0.0
      %1160 = vmatprep.subr.mxu0 0.0
      %1161 = vmatpush2.msra.mxu0 0.0
      %1162 = vmatprep.subr.mxu0 0.0
      %1163 = vmatpush2.msra.mxu0 0.0
      %1164 = vmatprep.subr.mxu0 0.0
      %1165 = vmatpush2.msra.mxu0 0.0
      %1166 = vmatprep.subr.mxu0 0.0
      %1167 = vmatpush2.msra.mxu0 0.0
      %1168 = vmatprep.subr.mxu0 0.0
      %1169 = vmatpush2.msra.mxu0 0.0
      %1170 = vmatprep.subr.mxu0 0.0
      %1171 = vmatpush2.msra.mxu0 0.0
      %1172 = vmatprep.subr.mxu0 0.0
      %1173 = vmatpush2.msra.mxu0 0.0
      %1174 = vmatprep.subr.mxu0 0.0
      %1175 = vmatpush2.msra.mxu0 0.0
      %1176 = vmatprep.subr.mxu0 0.0
      %1177 = vmatpush2.msra.mxu0 0.0
      %1178 = vmatprep.subr.mxu0 0.0
      %1179 = vmatpush2.msra.mxu0 0.0
      %1180 = vmatprep.mubr.f32.mxu0 0.0
      %1181 = vmatmul.mubr.f32.gmra.mxu0 %v1114
      %v1182 = vpop.f32.mrf.mxu0
      %v1183 = vadd.f32 0.0, %v1182
      %v1184 = vpop.f32.mrf.mxu0
      %1185 = vdwg.mxu0
      %1187 = vrot.lane.b32.xlu0 %v851, 8
      %v1188 = vpop.permute.xlu0 %1187
      %1191 = vrot.lane.b32.xlu0 %v1017, 16
      %v1192 = vpop.permute.xlu0 %1191
      %1195 = vrot.lane.b32.xlu0 %v1183, 24
      %v1196 = vpop.permute.xlu0 %1195
      %v1198 = vsel %vm525, %v685, %v1188
      %vm1199 = vcmask 130048
      %v1200 = vsel %vm1199, %v1198, %v1192
      %vm1201 = vcmask 195584
      %v1202 = vsel %vm1201, %v1200, %v1196
      %v1203 = vld [vmem:[%s3] sm:$0xff]
      %v1204 = vld [vmem:[%s3 + $0x8] sm:$0xff]
      %v1205 = vld [vmem:[%s3 + $0x10] sm:$0xff]
      %v1206 = vld [vmem:[%s3 + $0x18] sm:$0xff]
      %v1207 = vld [vmem:[%s4] sm:$0x1]
      %v1209 = vlaneseq
      %v1210 = vshrl.u32 %v1209, 7
      %v1211 = vsub.s32 0, %v1210
      %v1212 = vrot.slane %v1207, %v1211
      %v1215 = vsel %vm448, %v1202, 0
      %1217 = vmatprep.subr.mxu0 0.0
      %1218 = vmatpush1.msra.mxu0 0.0
      %1219 = vmatprep.subr.mxu0 0.0
      %1220 = vmatpush1.msra.mxu0 0.0
      %1221 = vmatprep.subr.mxu0 0.0
      %1222 = vmatpush1.msra.mxu0 0.0
      %1223 = vmatprep.subr.mxu0 0.0
      %1224 = vmatpush1.msra.mxu0 0.0
      %1225 = vmatprep.subr.mxu0 0.0
      %1226 = vmatpush1.msra.mxu0 0.0
      %1227 = vmatprep.subr.mxu0 0.0
      %1228 = vmatpush1.msra.mxu0 0.0
      %1229 = vmatprep.subr.mxu0 0.0
      %1230 = vmatpush1.msra.mxu0 0.0
      %1231 = vmatprep.subr.mxu0 0.0
      %1232 = vmatpush1.msra.mxu0 0.0
      %1233 = vmatprep.subr.mxu0 0.0
      %1234 = vmatpush1.msra.mxu0 0.0
      %1235 = vmatprep.subr.mxu0 0.0
      %1236 = vmatpush1.msra.mxu0 0.0
      %1237 = vmatprep.subr.mxu0 0.0
      %1238 = vmatpush1.msra.mxu0 0.0
      %1239 = vmatprep.subr.mxu0 0.0
      %1240 = vmatpush1.msra.mxu0 0.0
      %1241 = vmatprep.subr.mxu0 0.0
      %1242 = vmatpush1.msra.mxu0 %v1206
      %1243 = vmatprep.subr.mxu0 0.0
      %1244 = vmatpush1.msra.mxu0 %v1205
      %1245 = vmatprep.subr.mxu0 0.0
      %1246 = vmatpush1.msra.mxu0 %v1204
      %1247 = vmatprep.subr.mxu0 0.0
      %1248 = vmatpush1.msra.mxu0 %v1203
      %1249 = vmatprep.subr.mxu0 0.0
      %1250 = vmatpush2.msra.mxu0 0.0
      %1251 = vmatprep.subr.mxu0 0.0
      %1252 = vmatpush2.msra.mxu0 0.0
      %1253 = vmatprep.subr.mxu0 0.0
      %1254 = vmatpush2.msra.mxu0 0.0
      %1255 = vmatprep.subr.mxu0 0.0
      %1256 = vmatpush2.msra.mxu0 0.0
      %1257 = vmatprep.subr.mxu0 0.0
      %1258 = vmatpush2.msra.mxu0 0.0
      %1259 = vmatprep.subr.mxu0 0.0
      %1260 = vmatpush2.msra.mxu0 0.0
      %1261 = vmatprep.subr.mxu0 0.0
      %1262 = vmatpush2.msra.mxu0 0.0
      %1263 = vmatprep.subr.mxu0 0.0
      %1264 = vmatpush2.msra.mxu0 0.0
      %1265 = vmatprep.subr.mxu0 0.0
      %1266 = vmatpush2.msra.mxu0 0.0
      %1267 = vmatprep.subr.mxu0 0.0
      %1268 = vmatpush2.msra.mxu0 0.0
      %1269 = vmatprep.subr.mxu0 0.0
      %1270 = vmatpush2.msra.mxu0 0.0
      %1271 = vmatprep.subr.mxu0 0.0
      %1272 = vmatpush2.msra.mxu0 0.0
      %1273 = vmatprep.subr.mxu0 0.0
      %1274 = vmatpush2.msra.mxu0 0.0
      %1275 = vmatprep.subr.mxu0 0.0
      %1276 = vmatpush2.msra.mxu0 0.0
      %1277 = vmatprep.subr.mxu0 0.0
      %1278 = vmatpush2.msra.mxu0 0.0
      %1279 = vmatprep.subr.mxu0 0.0
      %1280 = vmatpush2.msra.mxu0 0.0
      %1281 = vmatprep.mubr.f32.mxu0 0.0
      %1282 = vmatmul.mubr.f32.gmra.mxu0 %v1215
      %v1283 = vpop.f32.mrf.mxu0
      %v1284 = vadd.f32 %v1212, %v1283
      %v1285 = vpop.f32.mrf.mxu0
      %1286 = vdwg.mxu0
      %v1287 = vadd.f32 %v436, %v1284
      %v1288 = vld [vmem:[%s5] sm:$0x1]
      %v1289 = vld [vmem:[%s6] sm:$0x1]
      %v1290 = vsel %vm448, %v1287, 0.0
      %1291 = vadd.xlane.f32.xlu0 %v1290
      %v1292 = vpop.xlane.xlu0 %1291
      %v1293 = vrcp.pop 32.0
      %v1294 = vmul.f32 %v1292, %v1293
      %v1295 = vsub.f32 %v1287, %v1294
      %v1296 = vmul.f32 %v1295, %v1295
      %v1297 = vsel %vm448, %v1296, 0.0
      %1298 = vadd.xlane.f32.xlu0 %v1297
      %v1299 = vpop.xlane.xlu0 %1298
      %v1300 = vmul.f32 %v1299, %v1293
      %v1301 = vadd.f32 %v1300, 1e-05
      %v1302 = vrsqrt.pop %v1301
      %v1303 = vmul.f32 %v1295, %v1302
      %v1305 = vlaneseq
      %v1306 = vshrl.u32 %v1305, 7
      %v1307 = vsub.s32 0, %v1306
      %v1308 = vrot.slane %v1288, %v1307
      %v1310 = vmul.f32 %v1303, %v1308
      %v1312 = vlaneseq
      %v1313 = vshrl.u32 %v1312, 7
      %v1314 = vsub.s32 0, %v1313
      %v1315 = vrot.slane %v1289, %v1314
      %v1317 = vadd.f32 %v1310, %v1315
      %v1318 = vld [vmem:[%s7] sm:$0xff]
      %v1319 = vld [vmem:[%s7 + $0x8] sm:$0xff]
      %v1320 = vld [vmem:[%s7 + $0x10] sm:$0xff]
      %v1321 = vld [vmem:[%s7 + $0x18] sm:$0xff]
      %v1322 = vld [vmem:[%s8] sm:$0x1]
      %v1324 = vlaneseq
      %v1325 = vshrl.u32 %v1324, 7
      %v1326 = vsub.s32 0, %v1325
      %v1327 = vrot.slane %v1322, %v1326
      %v1330 = vsel %vm448, %v1317, 0
      %1332 = vmatprep.subr.mxu0 0.0
      %1333 = vmatpush1.msra.mxu0 0.0
      %1334 = vmatprep.subr.mxu0 0.0
      %1335 = vmatpush1.msra.mxu0 0.0
      %1336 = vmatprep.subr.mxu0 0.0
      %1337 = vmatpush1.msra.mxu0 0.0
      %1338 = vmatprep.subr.mxu0 0.0
      %1339 = vmatpush1.msra.mxu0 0.0
      %1340 = vmatprep.subr.mxu0 0.0
      %1341 = vmatpush1.msra.mxu0 0.0
      %1342 = vmatprep.subr.mxu0 0.0
      %1343 = vmatpush1.msra.mxu0 0.0
      %1344 = vmatprep.subr.mxu0 0.0
      %1345 = vmatpush1.msra.mxu0 0.0
      %1346 = vmatprep.subr.mxu0 0.0
      %1347 = vmatpush1.msra.mxu0 0.0
      %1348 = vmatprep.subr.mxu0 0.0
      %1349 = vmatpush1.msra.mxu0 0.0
      %1350 = vmatprep.subr.mxu0 0.0
      %1351 = vmatpush1.msra.mxu0 0.0
      %1352 = vmatprep.subr.mxu0 0.0
      %1353 = vmatpush1.msra.mxu0 0.0
      %1354 = vmatprep.subr.mxu0 0.0
      %1355 = vmatpush1.msra.mxu0 0.0
      %1356 = vmatprep.subr.mxu0 0.0
      %1357 = vmatpush1.msra.mxu0 %v1321
      %1358 = vmatprep.subr.mxu0 0.0
      %1359 = vmatpush1.msra.mxu0 %v1320
      %1360 = vmatprep.subr.mxu0 0.0
      %1361 = vmatpush1.msra.mxu0 %v1319
      %1362 = vmatprep.subr.mxu0 0.0
      %1363 = vmatpush1.msra.mxu0 %v1318
      %1364 = vmatprep.subr.mxu0 0.0
      %1365 = vmatpush2.msra.mxu0 0.0
      %1366 = vmatprep.subr.mxu0 0.0
      %1367 = vmatpush2.msra.mxu0 0.0
      %1368 = vmatprep.subr.mxu0 0.0
      %1369 = vmatpush2.msra.mxu0 0.0
      %1370 = vmatprep.subr.mxu0 0.0
      %1371 = vmatpush2.msra.mxu0 0.0
      %1372 = vmatprep.subr.mxu0 0.0
      %1373 = vmatpush2.msra.mxu0 0.0
      %1374 = vmatprep.subr.mxu0 0.0
      %1375 = vmatpush2.msra.mxu0 0.0
      %1376 = vmatprep.subr.mxu0 0.0
      %1377 = vmatpush2.msra.mxu0 0.0
      %1378 = vmatprep.subr.mxu0 0.0
      %1379 = vmatpush2.msra.mxu0 0.0
      %1380 = vmatprep.subr.mxu0 0.0
      %1381 = vmatpush2.msra.mxu0 0.0
      %1382 = vmatprep.subr.mxu0 0.0
      %1383 = vmatpush2.msra.mxu0 0.0
      %1384 = vmatprep.subr.mxu0 0.0
      %1385 = vmatpush2.msra.mxu0 0.0
      %1386 = vmatprep.subr.mxu0 0.0
      %1387 = vmatpush2.msra.mxu0 0.0
      %1388 = vmatprep.subr.mxu0 0.0
      %1389 = vmatpush2.msra.mxu0 0.0
      %1390 = vmatprep.subr.mxu0 0.0
      %1391 = vmatpush2.msra.mxu0 0.0
      %1392 = vmatprep.subr.mxu0 0.0
      %1393 = vmatpush2.msra.mxu0 0.0
      %1394 = vmatprep.subr.mxu0 0.0
      %1395 = vmatpush2.msra.mxu0 0.0
      %1396 = vmatprep.mubr.f32.mxu0 0.0
      %1397 = vmatmul.mubr.f32.gmra.mxu0 %v1330
      %v1398 = vpop.f32.mrf.mxu0
      %v1399 = vadd.f32 %v1327, %v1398
      %v1400 = vpop.f32.mrf.mxu0
      %1401 = vdwg.mxu0
      %v1402 = vmax.f32 %v1399, 0.0
      %v1403 = vld [vmem:[%s9] sm:$0xff]
      %v1404 = vld [vmem:[%s9 + $0x8] sm:$0xff]
      %v1405 = vld [vmem:[%s9 + $0x10] sm:$0xff]
      %v1406 = vld [vmem:[%s9 + $0x18] sm:$0xff]
      %v1407 = vld [vmem:[%s9 + $0x20] sm:$0xff]
      %v1408 = vld [vmem:[%s9 + $0x28] sm:$0xff]
      %v1409 = vld [vmem:[%s9 + $0x30] sm:$0xff]
      %v1410 = vld [vmem:[%s9 + $0x38] sm:$0xff]
      %v1411 = vld [vmem:[%s9 + $0x40] sm:$0xff]
      %v1412 = vld [vmem:[%s9 + $0x48] sm:$0xff]
      %v1413 = vld [vmem:[%s9 + $0x50] sm:$0xff]
      %v1414 = vld [vmem:[%s9 + $0x58] sm:$0xff]
      %v1415 = vld [vmem:[%s9 + $0x60] sm:$0xff]
      %v1416 = vld [vmem:[%s9 + $0x68] sm:$0xff]
      %v1417 = vld [vmem:[%s9 + $0x70] sm:$0xff]
      %v1418 = vld [vmem:[%s9 + $0x78] sm:$0xff]
      %v1419 = vld [vmem:[%s10] sm:$0x1]
      %v1421 = vlaneseq
      %v1422 = vshrl.u32 %v1421, 7
      %v1423 = vsub.s32 0, %v1422
      %v1424 = vrot.slane %v1419, %v1423
      %1426 = vmatprep.subr.mxu0 0.0
      %1427 = vmatpush1.msra.mxu0 %v1418
      %1428 = vmatprep.subr.mxu0 0.0
      %1429 = vmatpush1.msra.mxu0 %v1417
      %1430 = vmatprep.subr.mxu0 0.0
      %1431 = vmatpush1.msra.mxu0 %v1416
      %1432 = vmatprep.subr.mxu0 0.0
      %1433 = vmatpush1.msra.mxu0 %v1415
      %1434 = vmatprep.subr.mxu0 0.0
      %1435 = vmatpush1.msra.mxu0 %v1414
      %1436 = vmatprep.subr.mxu0 0.0
      %1437 = vmatpush1.msra.mxu0 %v1413
      %1438 = vmatprep.subr.mxu0 0.0
      %1439 = vmatpush1.msra.mxu0 %v1412
      %1440 = vmatprep.subr.mxu0 0.0
      %1441 = vmatpush1.msra.mxu0 %v1411
      %1442 = vmatprep.subr.mxu0 0.0
      %1443 = vmatpush1.msra.mxu0 %v1410
      %1444 = vmatprep.subr.mxu0 0.0
      %1445 = vmatpush1.msra.mxu0 %v1409
      %1446 = vmatprep.subr.mxu0 0.0
      %1447 = vmatpush1.msra.mxu0 %v1408
      %1448 = vmatprep.subr.mxu0 0.0
      %1449 = vmatpush1.msra.mxu0 %v1407
      %1450 = vmatprep.subr.mxu0 0.0
      %1451 = vmatpush1.msra.mxu0 %v1406
      %1452 = vmatprep.subr.mxu0 0.0
      %1453 = vmatpush1.msra.mxu0 %v1405
      %1454 = vmatprep.subr.mxu0 0.0
      %1455 = vmatpush1.msra.mxu0 %v1404
      %1456 = vmatprep.subr.mxu0 0.0
      %1457 = vmatpush1.msra.mxu0 %v1403
      %1458 = vmatprep.subr.mxu0 0.0
      %1459 = vmatpush2.msra.mxu0 0.0
      %1460 = vmatprep.subr.mxu0 0.0
      %1461 = vmatpush2.msra.mxu0 0.0
      %1462 = vmatprep.subr.mxu0 0.0
      %1463 = vmatpush2.msra.mxu0 0.0
      %1464 = vmatprep.subr.mxu0 0.0
      %1465 = vmatpush2.msra.mxu0 0.0
      %1466 = vmatprep.subr.mxu0 0.0
      %1467 = vmatpush2.msra.mxu0 0.0
      %1468 = vmatprep.subr.mxu0 0.0
      %1469 = vmatpush2.msra.mxu0 0.0
      %1470 = vmatprep.subr.mxu0 0.0
      %1471 = vmatpush2.msra.mxu0 0.0
      %1472 = vmatprep.subr.mxu0 0.0
      %1473 = vmatpush2.msra.mxu0 0.0
      %1474 = vmatprep.subr.mxu0 0.0
      %1475 = vmatpush2.msra.mxu0 0.0
      %1476 = vmatprep.subr.mxu0 0.0
      %1477 = vmatpush2.msra.mxu0 0.0
      %1478 = vmatprep.subr.mxu0 0.0
      %1479 = vmatpush2.msra.mxu0 0.0
      %1480 = vmatprep.subr.mxu0 0.0
      %1481 = vmatpush2.msra.mxu0 0.0
      %1482 = vmatprep.subr.mxu0 0.0
      %1483 = vmatpush2.msra.mxu0 0.0
      %1484 = vmatprep.subr.mxu0 0.0
      %1485 = vmatpush2.msra.mxu0 0.0
      %1486 = vmatprep.subr.mxu0 0.0
      %1487 = vmatpush2.msra.mxu0 0.0
      %1488 = vmatprep.subr.mxu0 0.0
      %1489 = vmatpush2.msra.mxu0 0.0
      %1490 = vmatprep.mubr.f32.mxu0 0.0
      %1491 = vmatmul.mubr.f32.gmra.mxu0 %v1402
      %v1492 = vpop.f32.mrf.mxu0
      %v1493 = vadd.f32 %v1424, %v1492
      %v1494 = vpop.f32.mrf.mxu0
      %1495 = vdwg.mxu0
      %v1496 = vadd.f32 %v1317, %v1493
      %v1497 = vld [vmem:[%s11] sm:$0x1]
      %v1498 = vld [vmem:[%s12] sm:$0x1]
      %v1499 = vsel %vm448, %v1496, 0.0
      %1500 = vadd.xlane.f32.xlu0 %v1499
      %v1501 = vpop.xlane.xlu0 %1500
      %v1502 = vmul.f32 %v1501, %v1293
      %v1503 = vsub.f32 %v1496, %v1502
      %v1504 = vmul.f32 %v1503, %v1503
      %v1505 = vsel %vm448, %v1504, 0.0
      %1506 = vadd.xlane.f32.xlu0 %v1505
      %v1507 = vpop.xlane.xlu0 %1506
      %v1508 = vmul.f32 %v1507, %v1293
      %v1509 = vadd.f32 %v1508, 1e-05
      %v1510 = vrsqrt.pop %v1509
      %v1511 = vmul.f32 %v1503, %v1510
      %v1513 = vlaneseq
      %v1514 = vshrl.u32 %v1513, 7
      %v1515 = vsub.s32 0, %v1514
      %v1516 = vrot.slane %v1497, %v1515
      %v1518 = vmul.f32 %v1511, %v1516
      %v1520 = vlaneseq
      %v1521 = vshrl.u32 %v1520, 7
      %v1522 = vsub.s32 0, %v1521
      %v1523 = vrot.slane %v1498, %v1522
      %v1525 = vadd.f32 %v1518, %v1523
      %1526 = vst.msk [vmem:[%s435] sm:$0xff] %vm448, %v1525
      %p1527 = scmp.lt.s32.totalorder %s24, 1
      %s1528 = scalar_select %p1527, %s24, 1
      %s1529 = smul.addr %s1528, 8
      %s1530 = scalar_lea.vmem %s13, %s1529
      // Predicated region
      $region73: #{net_attention_forward.5} parent=71 // pred_check
        %p1531 = pneg %p320
      $region74: #{net_attention_forward.5} parent=71 // pred_check_branch
        %1533 = sbr.rel (%p1531) target = $region76
      $region75: #{net_attention_forward.5} parent=71 // pred_region
        _
      $region76: #{net_attention_forward.5} parent=71 // pred_fallthru
        _
    $region72: #{net_attention_forward.5} parent=5 // pred_fallthru
      _
    %p1534 = scmp.le.s32.totalorder 2, %s19
    // Predicated region
    $region77: #{net_attention_forward.5} parent=5 // pred_check
      %p1535 = pneg %p1534
    $region78: #{net_attention_forward.5} parent=5 // pred_check_branch
      %1537 = sbr.rel (%p1535) target = $region80
    $region79: #{net_attention_forward.5} parent=5 // pred_region
      %s1538 = ssub.s32 %s19, 2
      // Predicated region
      $region81: #{net_attention_forward.5} parent=79 // pred_check
        %p1539 = pneg %p326
      $region82: #{net_attention_forward.5} parent=79 // pred_check_branch
        %1541 = sbr.rel (%p1539) target = $region84
      $region83: #{net_attention_forward.5} parent=79 // pred_region
        %p1542 = scmp.lt.s32.totalorder %s25, 1
        %s1543 = scalar_select %p1542, %s25, 1
        %s1544 = smul.addr %s1543, 8
        %s1545 = scalar_lea.vmem %s13, %s1544
      $region84: #{net_attention_forward.5} parent=79 // pred_fallthru
        _
    $region80: #{net_attention_forward.5} parent=5 // pred_fallthru
      _
  $region6: #{net_attention_forward.5} parent=0 // loop_footer
    %s23 = sadd.s32 1, %s19
  $region7: #{net_attention_forward.5} parent=0 // loop_footer_branch
    %18 = sbr.rel target = $region3
  $region8: #{net_attention_forward.5} parent=0 // loop_exit
    _

</llo_original>
